<compile_context>
chip_gen: v7x
topology: tpu7x:2x2x1
jax: 0.10.0
libtpu: 0.0.40
codegen_flags: <defaults>
</compile_context>

<pallas_src>
from typing import NamedTuple

import numpy as np
import jax
import jax.numpy as jnp
from jax.experimental import pallas as pl
from jax.experimental.pallas import tpu as pltpu


# ---------------------------------------------------------------------------
# helpers
# ---------------------------------------------------------------------------
def _round_up(x, m):
    return ((x + m - 1) // m) * m


def _cdiv(a, b):
    return (a + b - 1) // b


def _split_dim(dim, max_tile):
    """Pad `dim` to a lane multiple and split into equal 128-multiple tiles.

    Never shrinks the tile toward 128 just to divide the original dim; instead
    the dim is padded UP to num_tiles * tile (padding bounded by ~128/tile).
    Returns (tile, num_tiles, padded_extent).
    """
    padded = _round_up(dim, 128)
    n = max(1, _cdiv(padded, max_tile))
    tile = _round_up(_cdiv(padded, n), 128)
    return tile, n, n * tile


# ---------------------------------------------------------------------------
# Pallas kernel: y = x @ W^T + b   (nn.Linear semantics), tiled over (N, K)
# ---------------------------------------------------------------------------
def _linear_kernel(x_ref, w_ref, b_ref, o_ref, acc_ref):
    # grid = (num_n, num_k): j = program_id(0) over output tiles,
    #                        k = program_id(1) over the contraction (innermost).
    k = pl.program_id(1)

    @pl.when(k == 0)
    def _init():
        acc_ref[...] = jnp.zeros_like(acc_ref)

    tk = w_ref.shape[1]
    if x_ref.shape[1] == tk:
        # Activations streamed per K tile (or single K tile).
        xk = x_ref[...]
    else:
        # Activations fully resident in VMEM: slice the current K tile.
        xk = x_ref[:, pl.ds(pl.multiple_of(k * tk, 128), tk)]

    # x: (B, TK), w: (TN, TK)  -- contract last dims -> (B, TN), f32 accumulate.
    acc_ref[...] += jax.lax.dot_general(
        xk, w_ref[...],
        dimension_numbers=(((1,), (1,)), ((), ())),
        preferred_element_type=jnp.float32,
    )

    @pl.when(k == pl.num_programs(1) - 1)
    def _finalize():
        o_ref[...] = (acc_ref[...] + b_ref[...]).astype(o_ref.dtype)


# ---------------------------------------------------------------------------
# Packed (pre-cast, pre-padded) linear parameters -- built once at init.
# ---------------------------------------------------------------------------
_WEIGHT_TILE_BYTES = 6 * 1024 * 1024   # per weight tile (x2 for double-buffering)
_MAX_TILE = 2048                       # cap per lane dim: long DMA rows, bounded tiles
_X_RESIDENT_BYTES = 2 * 1024 * 1024    # keep activations fully VMEM-resident below this


class PackedLinear(NamedTuple):
    weight: jax.Array          # (dout_p, din_p), compute dtype, zero-padded
    bias: jax.Array            # (1, dout_p), f32, zero-padded
    in_dim: int
    out_dim: int
    din_p: int
    dout_p: int
    tn: int
    tk: int
    num_n: int
    num_k: int
    compute_dtype: np.dtype


def pack_linear_params(weight, bias, compute_dtype=jnp.bfloat16):
    """Cast + pad nn.Linear params once so the kernel is their only reader."""
    Dout, Din = weight.shape
    cdt = np.dtype(compute_dtype)
    itemsize = cdt.itemsize

    # K tile: as large as possible (long contiguous rows per weight-tile DMA).
    tk, num_k, din_p = _split_dim(Din, _MAX_TILE)
    # N tile: bounded so one double-buffered weight tile stays well inside the
    # scoped-VMEM budget of every generation (v7x: 64 MiB phys / 32 MiB scoped).
    max_tn = max(128, min(_MAX_TILE,
                          (_WEIGHT_TILE_BYTES // (tk * itemsize)) // 128 * 128))
    tn, num_n, dout_p = _split_dim(Dout, max_tn)

    # v7x megacore: prefer >=2 tiles on the "parallel" N axis so both
    # TensorCores get work -- but only when the extra N padding is small
    # (<=12.5%), otherwise the added weight HBM traffic hurts v5e/v6e more
    # than the second core helps v7x.
    if num_n == 1 and dout_p >= 256:
        tn2 = _round_up(_cdiv(dout_p, 2), 128)
        if 2 * tn2 <= dout_p + dout_p // 8:
            tn, num_n, dout_p = tn2, 2, 2 * tn2

    wc = weight.astype(cdt)                       # (Dout, Din): no W.T copy
    if (dout_p, din_p) != (Dout, Din):
        wc = jnp.pad(wc, ((0, dout_p - Dout), (0, din_p - Din)))
    bc = bias.astype(jnp.float32).reshape(1, Dout)
    if dout_p != Dout:
        bc = jnp.pad(bc, ((0, 0), (0, dout_p - Dout)))

    return PackedLinear(weight=wc, bias=bc, in_dim=Din, out_dim=Dout,
                        din_p=din_p, dout_p=dout_p, tn=tn, tk=tk,
                        num_n=num_n, num_k=num_k, compute_dtype=cdt)


def pallas_linear(x, params: PackedLinear, out_dtype=None):
    """x: (B, Din) -> (B, Dout) with y = x @ W^T + b (nn.Linear semantics)."""
    B, Din = x.shape
    p = params
    assert Din == p.in_dim
    out_dtype = out_dtype if out_dtype is not None else x.dtype

    itemsize = p.compute_dtype.itemsize
    sublane_pack = max(8, 32 // itemsize)      # f32: 8, bf16: 16, int8: 32
    b_p = _round_up(B, sublane_pack)

    xc = x.astype(p.compute_dtype)
    if (b_p, p.din_p) != (B, Din):
        xc = jnp.pad(xc, ((0, b_p - B), (0, p.din_p - Din)))

    # Keep activations fully VMEM-resident when small (avoids re-fetching each
    # K tile once per N tile); stream a (B, TK) tile per step otherwise.
    if b_p * p.din_p * itemsize <= _X_RESIDENT_BYTES:
        x_spec = pl.BlockSpec((b_p, p.din_p), lambda j, k: (0, 0))
    else:
        x_spec = pl.BlockSpec((b_p, p.tk), lambda j, k: (0, k))

    out = pl.pallas_call(
        _linear_kernel,
        out_shape=jax.ShapeDtypeStruct((b_p, p.dout_p), out_dtype),
        grid_spec=pltpu.PrefetchScalarGridSpec(
            num_scalar_prefetch=0,
            grid=(p.num_n, p.num_k),                               # K innermost
            in_specs=[
                x_spec,                                            # activations
                pl.BlockSpec((p.tn, p.tk), lambda j, k: (j, k)),   # weight (Dout, Din)
                pl.BlockSpec((1, p.tn), lambda j, k: (0, j)),      # bias
            ],
            out_specs=pl.BlockSpec((b_p, p.tn), lambda j, k: (0, j)),
            scratch_shapes=[pltpu.VMEM((b_p, p.tn), jnp.float32)],
        ),
        compiler_params=pltpu.CompilerParams(
            dimension_semantics=("parallel", "arbitrary"),
            # 2 x ~6 MiB double-buffered weight tiles + resident activations +
            # accumulator fit with headroom; also raises v5e's 16 MiB default.
            vmem_limit_bytes=32 * 1024 * 1024,
        ),
    )(xc, p.weight, p.bias)

    if (b_p, p.dout_p) != (B, p.out_dim):
        out = out[:B, :p.out_dim]
    return out


# ---------------------------------------------------------------------------
# Bridge module (forward pass)
# ---------------------------------------------------------------------------
_MIN_PALLAS_WEIGHT_ELEMS = 128 * 128   # below ~64 KiB of f32 weight, launch overhead dominates


class Bridge:
    def __init__(self, rnn_type, mapper_type, encoder_dim, encoder_layer,
                 decoder_dim, decoder_layer, *, key=None,
                 compute_dtype=jnp.bfloat16):
        self.rnn_type = rnn_type
        self.parameter_type = mapper_type
        self.input_dim = encoder_dim * encoder_layer
        self.output_dim = decoder_dim * decoder_layer
        self.decoder_dim = decoder_dim
        self.decoder_layer = decoder_layer
        # bf16 weights (f32 accumulation) by default: this op is weight-HBM
        # bound on every generation, so halving weight bytes ~halves its time.
        self.compute_dtype = compute_dtype
        self._packed = None

        if self.parameter_type == 'mapping':
            if key is None:
                key = jax.random.PRNGKey(0)
            kw, kb = jax.random.split(key)
            # nn.Linear-style init: U(-1/sqrt(fan_in), 1/sqrt(fan_in))
            bound = 1.0 / float(self.input_dim) ** 0.5
            self.weight = jax.random.uniform(
                kw, (self.output_dim, self.input_dim), jnp.float32,
                minval=-bound, maxval=bound)
            self.bias = jax.random.uniform(
                kb, (self.output_dim,), jnp.float32,
                minval=-bound, maxval=bound)
            self._use_pallas = (
                self.input_dim * self.output_dim >= _MIN_PALLAS_WEIGHT_ELEMS)
            if self._use_pallas:
                # Cast + pad ONCE; every forward() the kernel is then the only
                # reader of the weight (no per-call cast/pad HBM round trip).
                self._packed = pack_linear_params(
                    self.weight, self.bias, self.compute_dtype)
        else:
            assert self.input_dim == self.output_dim, 'reflect requires equal dims'
            self.weight = None
            self.bias = None
            self._use_pallas = False

    def forward(self, input_tensor):
        """input_tensor: [layers, batch, hidden] -> [decoder_layer, batch, decoder_dim]"""
        layers, batch_size, hidden = input_tensor.shape
        # permute(1,0,2) + view(batch, -1): layout glue left to XLA.
        # TODO(synk): fuse this transpose/reshape into the kernel (3-D K grid over
        # (layer, hidden_chunk)) to skip one activation HBM round trip at large batch.
        reset = jnp.transpose(input_tensor, (1, 0, 2)).reshape(batch_size, -1)
        assert reset.shape[1] == self.input_dim, 'bridge dim is not right'

        if self.parameter_type == 'mapping':
            if self._use_pallas:
                out = pallas_linear(reset, self._packed, out_dtype=reset.dtype)
            else:
                out = reset @ self.weight.T + self.bias   # tiny: overhead dominates
        else:
            out = reset  # reflect

        out = out.reshape(-1, self.decoder_layer, self.decoder_dim)
        return jnp.transpose(out, (1, 0, 2))


# ---------------------------------------------------------------------------
if __name__ == "__main__":
    key = jax.random.PRNGKey(0)
    k_in, k_params = jax.random.split(key)

    # Small but representative shape:
    #   Din = 2*320 = 640, Dout = 2*288 = 576, batch = 6.
    # With the fixed tiling this runs as grid=(1,1): one 640x640 weight tile.
    encoder_dim, encoder_layer = 320, 2
    decoder_dim, decoder_layer = 288, 2
    batch = 6

    # input: [layers, batch, hidden]
    x = jax.random.normal(k_in, (encoder_layer, batch, encoder_dim), jnp.float32)
    reset = jnp.transpose(x, (1, 0, 2)).reshape(batch, -1)

    # --- default (bf16 weights, f32 accumulation) ----------------------------
    bridge = Bridge("lstm", "mapping", encoder_dim, encoder_layer,
                    decoder_dim, decoder_layer, key=k_params)
    y = bridge.forward(x)
    jax.block_until_ready(y)
    assert y.shape == (decoder_layer, batch, decoder_dim)

    ref_bf16 = jax.lax.dot_general(
        reset.astype(jnp.bfloat16), bridge.weight.astype(jnp.bfloat16),
        dimension_numbers=(((1,), (1,)), ((), ())),
        preferred_element_type=jnp.float32) + bridge.bias
    ref_bf16 = jnp.transpose(
        ref_bf16.reshape(batch, decoder_layer, decoder_dim), (1, 0, 2))
    assert jnp.allclose(y, ref_bf16, atol=5e-3, rtol=5e-3), \
        float(jnp.max(jnp.abs(y - ref_bf16)))

    # --- full f32 path --------------------------------------------------------
    bridge_f32 = Bridge("lstm", "mapping", encoder_dim, encoder_layer,
                        decoder_dim, decoder_layer, key=k_params,
                        compute_dtype=jnp.float32)
    y32 = bridge_f32.forward(x)
    jax.block_until_ready(y32)
    ref32 = jax.lax.dot_general(
        reset, bridge_f32.weight,
        dimension_numbers=(((1,), (1,)), ((), ())),
        precision=jax.lax.Precision.HIGHEST) + bridge_f32.bias
    ref32 = jnp.transpose(
        ref32.reshape(batch, decoder_layer, decoder_dim), (1, 0, 2))
    assert jnp.allclose(y32, ref32, atol=2e-3, rtol=2e-3), \
        float(jnp.max(jnp.abs(y32 - ref32)))

    # --- reflect path ---------------------------------------------------------
    bridge_r = Bridge("lstm", "reflect", encoder_dim, encoder_layer,
                      encoder_dim, encoder_layer)
    y_r = bridge_r.forward(x)
    ref_r = jnp.transpose(reset.reshape(batch, encoder_layer, encoder_dim), (1, 0, 2))
    assert jnp.allclose(y_r, ref_r)

    print("KERNEL_OK")
</pallas_src>

<mosaic_0001>
module attributes {stable_mosaic.version = 11 : i64} {
  func.func @_linear_kernel(%arg0: i32, %arg1: i32, %arg2: memref<16x640xbf16, #tpu.memory_space<vmem>>, %arg3: memref<640x640xbf16, #tpu.memory_space<vmem>>, %arg4: memref<1x640xf32, #tpu.memory_space<vmem>>, %arg5: memref<16x640xf32, #tpu.memory_space<vmem>>, %arg6: memref<16x640xf32, #tpu.memory_space<vmem>>) attributes {dimension_semantics = [#tpu.dimension_semantics<parallel>, #tpu.dimension_semantics<arbitrary>], iteration_bounds = array<i64: 1, 1>, scalar_prefetch = 0 : i64, scratch_operands = 1 : i64, tpu.core_type = #tpu.core_type<tc>, window_params = [{pipeline_mode = #tpu.pipeline_mode<synchronous>, transform_indices = @transform_0, window_bounds = array<i64: 16, 640>}, {transform_indices = @transform_1, window_bounds = array<i64: 640, 640>}, {transform_indices = @transform_2, window_bounds = array<i64: 1, 640>}, {transform_indices = @transform_3, window_bounds = array<i64: 16, 640>}]} {
    %c0_i32 = arith.constant 0 : i32
    %0 = arith.cmpi eq, %arg1, %c0_i32 : i32
    %1 = arith.extui %0 : i1 to i32
    %c0_i32_0 = arith.constant 0 : i32
    %2 = arith.cmpi ne, %1, %c0_i32_0 : i32
    scf.if %2 {
      %cst_10 = arith.constant 0.000000e+00 : f32
      %12 = vector.broadcast %cst_10 : f32 to vector<16x640xf32>
      %c0_11 = arith.constant 0 : index
      %c0_12 = arith.constant 0 : index
      %13 = vector.load %arg6[%c0_11, %c0_12] : memref<16x640xf32, #tpu.memory_space<vmem>>, vector<16x640xf32>
      tpu.vector_store %arg6[%c0_11, %c0_12], %12 {strides = array<i32>} : memref<16x640xf32, #tpu.memory_space<vmem>>, vector<16x640xf32>,
    } else {
    }
    %c0 = arith.constant 0 : index
    %c0_1 = arith.constant 0 : index
    %3 = vector.load %arg2[%c0, %c0_1] : memref<16x640xbf16, #tpu.memory_space<vmem>>, vector<16x640xbf16>
    %c0_2 = arith.constant 0 : index
    %c0_3 = arith.constant 0 : index
    %4 = vector.load %arg6[%c0_2, %c0_3] : memref<16x640xf32, #tpu.memory_space<vmem>>, vector<16x640xf32>
    %c0_4 = arith.constant 0 : index
    %c0_5 = arith.constant 0 : index
    %5 = vector.load %arg3[%c0_4, %c0_5] : memref<640x640xbf16, #tpu.memory_space<vmem>>, vector<640x640xbf16>
    %cst = arith.constant dense<0.000000e+00> : vector<16x640xf32>
    %6 = tpu.matmul %3, %5, %cst {dimension_numbers = #tpu.dot_dimension_numbers<[1], [1], [0], [0], [0, 0, 1, 0], [], []>} : vector<16x640xbf16>, vector<640x640xbf16>, vector<16x640xf32> -> vector<16x640xf32>
    %7 = arith.addf %4, %6 : vector<16x640xf32>
    %c0_6 = arith.constant 0 : index
    %c0_7 = arith.constant 0 : index
    %8 = vector.load %arg6[%c0_6, %c0_7] : memref<16x640xf32, #tpu.memory_space<vmem>>, vector<16x640xf32>
    tpu.vector_store %arg6[%c0_6, %c0_7], %7 {strides = array<i32>} : memref<16x640xf32, #tpu.memory_space<vmem>>, vector<16x640xf32>,
    %c0_i32_8 = arith.constant 0 : i32
    %9 = arith.cmpi eq, %arg1, %c0_i32_8 : i32
    %10 = arith.extui %9 : i1 to i32
    %c0_i32_9 = arith.constant 0 : i32
    %11 = arith.cmpi ne, %10, %c0_i32_9 : i32
    scf.if %11 {
      %c0_10 = arith.constant 0 : index
      %c0_11 = arith.constant 0 : index
      %12 = vector.load %arg6[%c0_10, %c0_11] : memref<16x640xf32, #tpu.memory_space<vmem>>, vector<16x640xf32>
      %c0_12 = arith.constant 0 : index
      %c0_13 = arith.constant 0 : index
      %13 = vector.load %arg4[%c0_12, %c0_13] : memref<1x640xf32, #tpu.memory_space<vmem>>, vector<1x640xf32>
      %14 = vector.broadcast %13 : vector<1x640xf32> to vector<16x640xf32>
      %15 = arith.addf %12, %14 : vector<16x640xf32>
      %c0_14 = arith.constant 0 : index
      %c0_15 = arith.constant 0 : index
      %16 = vector.load %arg5[%c0_14, %c0_15] : memref<16x640xf32, #tpu.memory_space<vmem>>, vector<16x640xf32>
      tpu.vector_store %arg5[%c0_14, %c0_15], %15 {strides = array<i32>} : memref<16x640xf32, #tpu.memory_space<vmem>>, vector<16x640xf32>,
    } else {
    }
    return
  }
  func.func @transform_0(%arg0: i32, %arg1: i32) -> (i32, i32) {
    %c0_i32 = arith.constant 0 : i32
    %c0_i32_0 = arith.constant 0 : i32
    %c0_i32_1 = arith.constant 0 : i32
    return %c0_i32, %c0_i32_0 : i32, i32
  }
  func.func @transform_1(%arg0: i32, %arg1: i32) -> (i32, i32) {
    %c0_i32 = arith.constant 0 : i32
    return %arg0, %arg1 : i32, i32
  }
  func.func @transform_2(%arg0: i32, %arg1: i32) -> (i32, i32) {
    %c0_i32 = arith.constant 0 : i32
    %c0_i32_0 = arith.constant 0 : i32
    return %c0_i32, %arg0 : i32, i32
  }
  func.func @transform_3(%arg0: i32, %arg1: i32) -> (i32, i32) {
    %c0_i32 = arith.constant 0 : i32
    %c0_i32_0 = arith.constant 0 : i32
    return %c0_i32, %arg0 : i32, i32
  }
}

</mosaic_0001>

<llo_original>
// kernel: tpu_custom_call.1
$region0: #{tpu_custom_call.1}
  #allocation0 [shape = 'u32[]', space=smem, size = 0x4, offset = 0x4, fixed_abs, tag = 'smem constant byte address 0x4 - core index']
  #allocation1 [shape = 'u32[144,128]{1,0:T(1,128)}', space=vmem, size = 0x12000, scoped, tag = 'internal scratch']
  #allocation2 [shape = 'f32[16,640]{1,0:T(8,128)}', space=vmem, size = 0xa000, scoped, tag = 'scratch operand']
  %s0 = inlined_call_operand.hbm [shape: bf16[16,640], index: 0, kind: input, shape index: {}]
  %s1 = inlined_call_operand.hbm [shape: bf16[640,640], index: 1, kind: input, shape index: {}]
  %s2 = inlined_call_operand.vmem [shape: f32[1,640], index: 2, kind: input, shape index: {}]
  %s3 = inlined_call_operand.hbm [shape: f32[16,640], index: 3, kind: output, shape index: {}]
  %s4 = sld [smem:[#allocation0]]
  $region38: #{tpu_custom_call.1} parent=0
    _
  %s6 = ssub.s32 1, %s4
  %s7 = scalar_select 0, %s6, %s4
  $region1: #{tpu_custom_call.1} parent=0
    #allocation3 [shape = 'u8[20480]{0}', space=vmem, size = 0x5000, scoped, tag = 'input window, operand 0, single buffered']
    #allocation4 [shape = 's32[1]{0}', space=sflag, size = 0x4, scoped, tag = 'scoped memory for tpu_custom_call.1']
    #allocation5 [shape = 's32[1]{0}', space=sflag, size = 0x4, scoped, tag = 'scoped memory for tpu_custom_call.1']
    #allocation6 [shape = 'u8[819200]{0}', space=vmem, size = 0xc8000, scoped, tag = 'input window, operand 1, single buffered']
    #allocation7 [shape = 's32[1]{0}', space=sflag, size = 0x4, scoped, tag = 'scoped memory for tpu_custom_call.1']
    #allocation8 [shape = 'u8[40960]{0}', space=vmem, size = 0xa000, scoped, tag = 'output window, operand 0, single buffered']
    %8 = vsyncpa [#allocation4], 0
    %9 = vsyncpa [#allocation7], 0
    %10 = vsyncpa [#allocation5], 0
    // Predicated region
    $region2: #{tpu_custom_call.1} parent=1 // pred_check
      _
    $region3: #{tpu_custom_call.1} parent=1 // pred_check_branch
      %12 = sbr.rel (0) target = $region5
    $region4: #{tpu_custom_call.1} parent=1 // pred_region
      %s14 = ssub.s32 640, 640
      %15 = vsyncadd [#allocation4], %s14
      %s16 = sshll.u32 [#allocation3], 4
      %s17 = int_to_ptr.vmem [resolvable:$true] %s16
      %22 = dma.hbm_to_vmem [thread:$0]  %s0, 640, %s17, [#allocation4], 320, 320, 20
    $region5: #{tpu_custom_call.1} parent=1 // pred_fallthru
      _
    // Predicated region
    $region6: #{tpu_custom_call.1} parent=1 // pred_check
      _
    $region7: #{tpu_custom_call.1} parent=1 // pred_check_branch
      %24 = sbr.rel (0) target = $region9
    $region8: #{tpu_custom_call.1} parent=1 // pred_region
      %s26 = ssub.s32 25600, 25600
      %27 = vsyncadd [#allocation7], %s26
      %s28 = sshll.u32 [#allocation6], 4
      %s29 = int_to_ptr.vmem [resolvable:$true] %s28
      %34 = dma.hbm_to_vmem [thread:$0]  %s1, 25600, %s29, [#allocation7], 320, 320, 20
    $region9: #{tpu_custom_call.1} parent=1 // pred_fallthru
      _
    // Predicated region
    $region10: #{tpu_custom_call.1} parent=1 // pred_check
      _
    $region11: #{tpu_custom_call.1} parent=1 // pred_check_branch
      %36 = sbr.rel (0) target = $region13
    $region12: #{tpu_custom_call.1} parent=1 // pred_region
      _
    $region13: #{tpu_custom_call.1} parent=1 // pred_fallthru
      _
    // Predicated region
    $region14: #{tpu_custom_call.1} parent=1 // pred_check
      _
    $region15: #{tpu_custom_call.1} parent=1 // pred_check_branch
      %38 = sbr.rel (0) target = $region17
    $region16: #{tpu_custom_call.1} parent=1 // pred_region
      %39 = dma.done [#allocation4], 640
    $region17: #{tpu_custom_call.1} parent=1 // pred_fallthru
      _
    // Predicated region
    $region18: #{tpu_custom_call.1} parent=1 // pred_check
      _
    $region19: #{tpu_custom_call.1} parent=1 // pred_check_branch
      %41 = sbr.rel (0) target = $region21
    $region20: #{tpu_custom_call.1} parent=1 // pred_region
      %42 = dma.done [#allocation7], 25600
    $region21: #{tpu_custom_call.1} parent=1 // pred_fallthru
      _
    %p44 = scmp.eq.s32.totalorder 0, 0
    // Predicated region
    $region22: #{tpu_custom_call.1} parent=1 // pred_check
      %p45 = pneg %p44
    $region23: #{tpu_custom_call.1} parent=1 // pred_check_branch
      %47 = sbr.rel (%p45) target = $region25
    $region24: #{tpu_custom_call.1} parent=1 // pred_region
      %48 = vst [vmem:[#allocation2] sm:$0xff] 0.0
      %49 = vst [vmem:[#allocation2 + $0x8] sm:$0xff] 0.0
      %50 = vst [vmem:[#allocation2 + $0x10] sm:$0xff] 0.0
      %51 = vst [vmem:[#allocation2 + $0x18] sm:$0xff] 0.0
      %52 = vst [vmem:[#allocation2 + $0x20] sm:$0xff] 0.0
      %53 = vst [vmem:[#allocation2 + $0x28] sm:$0xff] 0.0
      %54 = vst [vmem:[#allocation2 + $0x30] sm:$0xff] 0.0
      %55 = vst [vmem:[#allocation2 + $0x38] sm:$0xff] 0.0
      %56 = vst [vmem:[#allocation2 + $0x40] sm:$0xff] 0.0
      %57 = vst [vmem:[#allocation2 + $0x48] sm:$0xff] 0.0
    $region25: #{tpu_custom_call.1} parent=1 // pred_fallthru
      _
    %v58 = vld [vmem:[#allocation3] sm:$0xff]
    %v59 = vld [vmem:[#allocation3 + $0x8] sm:$0xff]
    %v60 = vld [vmem:[#allocation3 + $0x10] sm:$0xf]
    %v61 = vld [vmem:[#allocation3 + $0x14] sm:$0xff]
    %v62 = vld [vmem:[#allocation3 + $0x1c] sm:$0xff]
    %v63 = vld [vmem:[#allocation3 + $0x24] sm:$0xf]
    %v64 = vld [vmem:[#allocation2] sm:$0xff]
    %v65 = vld [vmem:[#allocation2 + $0x8] sm:$0xff]
    %v66 = vld [vmem:[#allocation2 + $0x10] sm:$0xff]
    %v67 = vld [vmem:[#allocation2 + $0x18] sm:$0xff]
    %v68 = vld [vmem:[#allocation2 + $0x20] sm:$0xff]
    %v69 = vld [vmem:[#allocation2 + $0x28] sm:$0xff]
    %v70 = vld [vmem:[#allocation2 + $0x30] sm:$0xff]
    %v71 = vld [vmem:[#allocation2 + $0x38] sm:$0xff]
    %v72 = vld [vmem:[#allocation2 + $0x40] sm:$0xff]
    %v73 = vld [vmem:[#allocation2 + $0x48] sm:$0xff]
    %v74 = vld [vmem:[#allocation6] sm:$0xff]
    %v75 = vld [vmem:[#allocation6 + $0x8] sm:$0xff]
    %v76 = vld [vmem:[#allocation6 + $0x10] sm:$0xf]
    %v77 = vld [vmem:[#allocation6 + $0x14] sm:$0xff]
    %v78 = vld [vmem:[#allocation6 + $0x1c] sm:$0xff]
    %v79 = vld [vmem:[#allocation6 + $0x24] sm:$0xf]
    %v80 = vld [vmem:[#allocation6 + $0x28] sm:$0xff]
    %v81 = vld [vmem:[#allocation6 + $0x30] sm:$0xff]
    %v82 = vld [vmem:[#allocation6 + $0x38] sm:$0xf]
    %v83 = vld [vmem:[#allocation6 + $0x3c] sm:$0xff]
    %v84 = vld [vmem:[#allocation6 + $0x44] sm:$0xff]
    %v85 = vld [vmem:[#allocation6 + $0x4c] sm:$0xf]
    %v86 = vld [vmem:[#allocation6 + $0x50] sm:$0xff]
    %v87 = vld [vmem:[#allocation6 + $0x58] sm:$0xff]
    %v88 = vld [vmem:[#allocation6 + $0x60] sm:$0xf]
    %v89 = vld [vmem:[#allocation6 + $0x64] sm:$0xff]
    %v90 = vld [vmem:[#allocation6 + $0x6c] sm:$0xff]
    %v91 = vld [vmem:[#allocation6 + $0x74] sm:$0xf]
    %v92 = vld [vmem:[#allocation6 + $0x78] sm:$0xff]
    %v93 = vld [vmem:[#allocation6 + $0x80] sm:$0xff]
    %v94 = vld [vmem:[#allocation6 + $0x88] sm:$0xf]
    %v95 = vld [vmem:[#allocation6 + $0x8c] sm:$0xff]
    %v96 = vld [vmem:[#allocation6 + $0x94] sm:$0xff]
    %v97 = vld [vmem:[#allocation6 + $0x9c] sm:$0xf]
    %v98 = vld [vmem:[#allocation6 + $0xa0] sm:$0xff]
    %v99 = vld [vmem:[#allocation6 + $0xa8] sm:$0xff]
    %v100 = vld [vmem:[#allocation6 + $0xb0] sm:$0xf]
    %v101 = vld [vmem:[#allocation6 + $0xb4] sm:$0xff]
    %v102 = vld [vmem:[#allocation6 + $0xbc] sm:$0xff]
    %v103 = vld [vmem:[#allocation6 + $0xc4] sm:$0xf]
    %v104 = vld [vmem:[#allocation6 + $0xc8] sm:$0xff]
    %v105 = vld [vmem:[#allocation6 + $0xd0] sm:$0xff]
    %v106 = vld [vmem:[#allocation6 + $0xd8] sm:$0xf]
    %v107 = vld [vmem:[#allocation6 + $0xdc] sm:$0xff]
    %v108 = vld [vmem:[#allocation6 + $0xe4] sm:$0xff]
    %v109 = vld [vmem:[#allocation6 + $0xec] sm:$0xf]
    %v110 = vld [vmem:[#allocation6 + $0xf0] sm:$0xff]
    %v111 = vld [vmem:[#allocation6 + $0xf8] sm:$0xff]
    %v112 = vld [vmem:[#allocation6 + $0x100] sm:$0xf]
    %v113 = vld [vmem:[#allocation6 + $0x104] sm:$0xff]
    %v114 = vld [vmem:[#allocation6 + $0x10c] sm:$0xff]
    %v115 = vld [vmem:[#allocation6 + $0x114] sm:$0xf]
    %v116 = vld [vmem:[#allocation6 + $0x118] sm:$0xff]
    %v117 = vld [vmem:[#allocation6 + $0x120] sm:$0xff]
    %v118 = vld [vmem:[#allocation6 + $0x128] sm:$0xf]
    %v119 = vld [vmem:[#allocation6 + $0x12c] sm:$0xff]
    %v120 = vld [vmem:[#allocation6 + $0x134] sm:$0xff]
    %v121 = vld [vmem:[#allocation6 + $0x13c] sm:$0xf]
    %v122 = vld [vmem:[#allocation6 + $0x140] sm:$0xff]
    %v123 = vld [vmem:[#allocation6 + $0x148] sm:$0xff]
    %v124 = vld [vmem:[#allocation6 + $0x150] sm:$0xf]
    %v125 = vld [vmem:[#allocation6 + $0x154] sm:$0xff]
    %v126 = vld [vmem:[#allocation6 + $0x15c] sm:$0xff]
    %v127 = vld [vmem:[#allocation6 + $0x164] sm:$0xf]
    %v128 = vld [vmem:[#allocation6 + $0x168] sm:$0xff]
    %v129 = vld [vmem:[#allocation6 + $0x170] sm:$0xff]
    %v130 = vld [vmem:[#allocation6 + $0x178] sm:$0xf]
    %v131 = vld [vmem:[#allocation6 + $0x17c] sm:$0xff]
    %v132 = vld [vmem:[#allocation6 + $0x184] sm:$0xff]
    %v133 = vld [vmem:[#allocation6 + $0x18c] sm:$0xf]
    %v134 = vld [vmem:[#allocation6 + $0x190] sm:$0xff]
    %v135 = vld [vmem:[#allocation6 + $0x198] sm:$0xff]
    %v136 = vld [vmem:[#allocation6 + $0x1a0] sm:$0xf]
    %v137 = vld [vmem:[#allocation6 + $0x1a4] sm:$0xff]
    %v138 = vld [vmem:[#allocation6 + $0x1ac] sm:$0xff]
    %v139 = vld [vmem:[#allocation6 + $0x1b4] sm:$0xf]
    %v140 = vld [vmem:[#allocation6 + $0x1b8] sm:$0xff]
    %v141 = vld [vmem:[#allocation6 + $0x1c0] sm:$0xff]
    %v142 = vld [vmem:[#allocation6 + $0x1c8] sm:$0xf]
    %v143 = vld [vmem:[#allocation6 + $0x1cc] sm:$0xff]
    %v144 = vld [vmem:[#allocation6 + $0x1d4] sm:$0xff]
    %v145 = vld [vmem:[#allocation6 + $0x1dc] sm:$0xf]
    %v146 = vld [vmem:[#allocation6 + $0x1e0] sm:$0xff]
    %v147 = vld [vmem:[#allocation6 + $0x1e8] sm:$0xff]
    %v148 = vld [vmem:[#allocation6 + $0x1f0] sm:$0xf]
    %v149 = vld [vmem:[#allocation6 + $0x1f4] sm:$0xff]
    %v150 = vld [vmem:[#allocation6 + $0x1fc] sm:$0xff]
    %v151 = vld [vmem:[#allocation6 + $0x204] sm:$0xf]
    %v152 = vld [vmem:[#allocation6 + $0x208] sm:$0xff]
    %v153 = vld [vmem:[#allocation6 + $0x210] sm:$0xff]
    %v154 = vld [vmem:[#allocation6 + $0x218] sm:$0xf]
    %v155 = vld [vmem:[#allocation6 + $0x21c] sm:$0xff]
    %v156 = vld [vmem:[#allocation6 + $0x224] sm:$0xff]
    %v157 = vld [vmem:[#allocation6 + $0x22c] sm:$0xf]
    %v158 = vld [vmem:[#allocation6 + $0x230] sm:$0xff]
    %v159 = vld [vmem:[#allocation6 + $0x238] sm:$0xff]
    %v160 = vld [vmem:[#allocation6 + $0x240] sm:$0xf]
    %v161 = vld [vmem:[#allocation6 + $0x244] sm:$0xff]
    %v162 = vld [vmem:[#allocation6 + $0x24c] sm:$0xff]
    %v163 = vld [vmem:[#allocation6 + $0x254] sm:$0xf]
    %v164 = vld [vmem:[#allocation6 + $0x258] sm:$0xff]
    %v165 = vld [vmem:[#allocation6 + $0x260] sm:$0xff]
    %v166 = vld [vmem:[#allocation6 + $0x268] sm:$0xf]
    %v167 = vld [vmem:[#allocation6 + $0x26c] sm:$0xff]
    %v168 = vld [vmem:[#allocation6 + $0x274] sm:$0xff]
    %v169 = vld [vmem:[#allocation6 + $0x27c] sm:$0xf]
    %v170 = vld [vmem:[#allocation6 + $0x280] sm:$0xff]
    %v171 = vld [vmem:[#allocation6 + $0x288] sm:$0xff]
    %v172 = vld [vmem:[#allocation6 + $0x290] sm:$0xf]
    %v173 = vld [vmem:[#allocation6 + $0x294] sm:$0xff]
    %v174 = vld [vmem:[#allocation6 + $0x29c] sm:$0xff]
    %v175 = vld [vmem:[#allocation6 + $0x2a4] sm:$0xf]
    %v176 = vld [vmem:[#allocation6 + $0x2a8] sm:$0xff]
    %v177 = vld [vmem:[#allocation6 + $0x2b0] sm:$0xff]
    %v178 = vld [vmem:[#allocation6 + $0x2b8] sm:$0xf]
    %v179 = vld [vmem:[#allocation6 + $0x2bc] sm:$0xff]
    %v180 = vld [vmem:[#allocation6 + $0x2c4] sm:$0xff]
    %v181 = vld [vmem:[#allocation6 + $0x2cc] sm:$0xf]
    %v182 = vld [vmem:[#allocation6 + $0x2d0] sm:$0xff]
    %v183 = vld [vmem:[#allocation6 + $0x2d8] sm:$0xff]
    %v184 = vld [vmem:[#allocation6 + $0x2e0] sm:$0xf]
    %v185 = vld [vmem:[#allocation6 + $0x2e4] sm:$0xff]
    %v186 = vld [vmem:[#allocation6 + $0x2ec] sm:$0xff]
    %v187 = vld [vmem:[#allocation6 + $0x2f4] sm:$0xf]
    %v188 = vld [vmem:[#allocation6 + $0x2f8] sm:$0xff]
    %v189 = vld [vmem:[#allocation6 + $0x300] sm:$0xff]
    %v190 = vld [vmem:[#allocation6 + $0x308] sm:$0xf]
    %v191 = vld [vmem:[#allocation6 + $0x30c] sm:$0xff]
    %v192 = vld [vmem:[#allocation6 + $0x314] sm:$0xff]
    %v193 = vld [vmem:[#allocation6 + $0x31c] sm:$0xf]
    %v194 = vld [vmem:[#allocation6 + $0x320] sm:$0xff]
    %v195 = vld [vmem:[#allocation6 + $0x328] sm:$0xff]
    %v196 = vld [vmem:[#allocation6 + $0x330] sm:$0xf]
    %v197 = vld [vmem:[#allocation6 + $0x334] sm:$0xff]
    %v198 = vld [vmem:[#allocation6 + $0x33c] sm:$0xff]
    %v199 = vld [vmem:[#allocation6 + $0x344] sm:$0xf]
    %v200 = vld [vmem:[#allocation6 + $0x348] sm:$0xff]
    %v201 = vld [vmem:[#allocation6 + $0x350] sm:$0xff]
    %v202 = vld [vmem:[#allocation6 + $0x358] sm:$0xf]
    %v203 = vld [vmem:[#allocation6 + $0x35c] sm:$0xff]
    %v204 = vld [vmem:[#allocation6 + $0x364] sm:$0xff]
    %v205 = vld [vmem:[#allocation6 + $0x36c] sm:$0xf]
    %v206 = vld [vmem:[#allocation6 + $0x370] sm:$0xff]
    %v207 = vld [vmem:[#allocation6 + $0x378] sm:$0xff]
    %v208 = vld [vmem:[#allocation6 + $0x380] sm:$0xf]
    %v209 = vld [vmem:[#allocation6 + $0x384] sm:$0xff]
    %v210 = vld [vmem:[#allocation6 + $0x38c] sm:$0xff]
    %v211 = vld [vmem:[#allocation6 + $0x394] sm:$0xf]
    %v212 = vld [vmem:[#allocation6 + $0x398] sm:$0xff]
    %v213 = vld [vmem:[#allocation6 + $0x3a0] sm:$0xff]
    %v214 = vld [vmem:[#allocation6 + $0x3a8] sm:$0xf]
    %v215 = vld [vmem:[#allocation6 + $0x3ac] sm:$0xff]
    %v216 = vld [vmem:[#allocation6 + $0x3b4] sm:$0xff]
    %v217 = vld [vmem:[#allocation6 + $0x3bc] sm:$0xf]
    %v218 = vld [vmem:[#allocation6 + $0x3c0] sm:$0xff]
    %v219 = vld [vmem:[#allocation6 + $0x3c8] sm:$0xff]
    %v220 = vld [vmem:[#allocation6 + $0x3d0] sm:$0xf]
    %v221 = vld [vmem:[#allocation6 + $0x3d4] sm:$0xff]
    %v222 = vld [vmem:[#allocation6 + $0x3dc] sm:$0xff]
    %v223 = vld [vmem:[#allocation6 + $0x3e4] sm:$0xf]
    %v224 = vld [vmem:[#allocation6 + $0x3e8] sm:$0xff]
    %v225 = vld [vmem:[#allocation6 + $0x3f0] sm:$0xff]
    %v226 = vld [vmem:[#allocation6 + $0x3f8] sm:$0xf]
    %v227 = vld [vmem:[#allocation6 + $0x3fc] sm:$0xff]
    %v228 = vld [vmem:[#allocation6 + $0x404] sm:$0xff]
    %v229 = vld [vmem:[#allocation6 + $0x40c] sm:$0xf]
    %v230 = vld [vmem:[#allocation6 + $0x410] sm:$0xff]
    %v231 = vld [vmem:[#allocation6 + $0x418] sm:$0xff]
    %v232 = vld [vmem:[#allocation6 + $0x420] sm:$0xf]
    %v233 = vld [vmem:[#allocation6 + $0x424] sm:$0xff]
    %v234 = vld [vmem:[#allocation6 + $0x42c] sm:$0xff]
    %v235 = vld [vmem:[#allocation6 + $0x434] sm:$0xf]
    %v236 = vld [vmem:[#allocation6 + $0x438] sm:$0xff]
    %v237 = vld [vmem:[#allocation6 + $0x440] sm:$0xff]
    %v238 = vld [vmem:[#allocation6 + $0x448] sm:$0xf]
    %v239 = vld [vmem:[#allocation6 + $0x44c] sm:$0xff]
    %v240 = vld [vmem:[#allocation6 + $0x454] sm:$0xff]
    %v241 = vld [vmem:[#allocation6 + $0x45c] sm:$0xf]
    %v242 = vld [vmem:[#allocation6 + $0x460] sm:$0xff]
    %v243 = vld [vmem:[#allocation6 + $0x468] sm:$0xff]
    %v244 = vld [vmem:[#allocation6 + $0x470] sm:$0xf]
    %v245 = vld [vmem:[#allocation6 + $0x474] sm:$0xff]
    %v246 = vld [vmem:[#allocation6 + $0x47c] sm:$0xff]
    %v247 = vld [vmem:[#allocation6 + $0x484] sm:$0xf]
    %v248 = vld [vmem:[#allocation6 + $0x488] sm:$0xff]
    %v249 = vld [vmem:[#allocation6 + $0x490] sm:$0xff]
    %v250 = vld [vmem:[#allocation6 + $0x498] sm:$0xf]
    %v251 = vld [vmem:[#allocation6 + $0x49c] sm:$0xff]
    %v252 = vld [vmem:[#allocation6 + $0x4a4] sm:$0xff]
    %v253 = vld [vmem:[#allocation6 + $0x4ac] sm:$0xf]
    %v254 = vld [vmem:[#allocation6 + $0x4b0] sm:$0xff]
    %v255 = vld [vmem:[#allocation6 + $0x4b8] sm:$0xff]
    %v256 = vld [vmem:[#allocation6 + $0x4c0] sm:$0xf]
    %v257 = vld [vmem:[#allocation6 + $0x4c4] sm:$0xff]
    %v258 = vld [vmem:[#allocation6 + $0x4cc] sm:$0xff]
    %v259 = vld [vmem:[#allocation6 + $0x4d4] sm:$0xf]
    %v260 = vld [vmem:[#allocation6 + $0x4d8] sm:$0xff]
    %v261 = vld [vmem:[#allocation6 + $0x4e0] sm:$0xff]
    %v262 = vld [vmem:[#allocation6 + $0x4e8] sm:$0xf]
    %v263 = vld [vmem:[#allocation6 + $0x4ec] sm:$0xff]
    %v264 = vld [vmem:[#allocation6 + $0x4f4] sm:$0xff]
    %v265 = vld [vmem:[#allocation6 + $0x4fc] sm:$0xf]
    %v266 = vld [vmem:[#allocation6 + $0x500] sm:$0xff]
    %v267 = vld [vmem:[#allocation6 + $0x508] sm:$0xff]
    %v268 = vld [vmem:[#allocation6 + $0x510] sm:$0xf]
    %v269 = vld [vmem:[#allocation6 + $0x514] sm:$0xff]
    %v270 = vld [vmem:[#allocation6 + $0x51c] sm:$0xff]
    %v271 = vld [vmem:[#allocation6 + $0x524] sm:$0xf]
    %v272 = vld [vmem:[#allocation6 + $0x528] sm:$0xff]
    %v273 = vld [vmem:[#allocation6 + $0x530] sm:$0xff]
    %v274 = vld [vmem:[#allocation6 + $0x538] sm:$0xf]
    %v275 = vld [vmem:[#allocation6 + $0x53c] sm:$0xff]
    %v276 = vld [vmem:[#allocation6 + $0x544] sm:$0xff]
    %v277 = vld [vmem:[#allocation6 + $0x54c] sm:$0xf]
    %v278 = vld [vmem:[#allocation6 + $0x550] sm:$0xff]
    %v279 = vld [vmem:[#allocation6 + $0x558] sm:$0xff]
    %v280 = vld [vmem:[#allocation6 + $0x560] sm:$0xf]
    %v281 = vld [vmem:[#allocation6 + $0x564] sm:$0xff]
    %v282 = vld [vmem:[#allocation6 + $0x56c] sm:$0xff]
    %v283 = vld [vmem:[#allocation6 + $0x574] sm:$0xf]
    %v284 = vld [vmem:[#allocation6 + $0x578] sm:$0xff]
    %v285 = vld [vmem:[#allocation6 + $0x580] sm:$0xff]
    %v286 = vld [vmem:[#allocation6 + $0x588] sm:$0xf]
    %v287 = vld [vmem:[#allocation6 + $0x58c] sm:$0xff]
    %v288 = vld [vmem:[#allocation6 + $0x594] sm:$0xff]
    %v289 = vld [vmem:[#allocation6 + $0x59c] sm:$0xf]
    %v290 = vld [vmem:[#allocation6 + $0x5a0] sm:$0xff]
    %v291 = vld [vmem:[#allocation6 + $0x5a8] sm:$0xff]
    %v292 = vld [vmem:[#allocation6 + $0x5b0] sm:$0xf]
    %v293 = vld [vmem:[#allocation6 + $0x5b4] sm:$0xff]
    %v294 = vld [vmem:[#allocation6 + $0x5bc] sm:$0xff]
    %v295 = vld [vmem:[#allocation6 + $0x5c4] sm:$0xf]
    %v296 = vld [vmem:[#allocation6 + $0x5c8] sm:$0xff]
    %v297 = vld [vmem:[#allocation6 + $0x5d0] sm:$0xff]
    %v298 = vld [vmem:[#allocation6 + $0x5d8] sm:$0xf]
    %v299 = vld [vmem:[#allocation6 + $0x5dc] sm:$0xff]
    %v300 = vld [vmem:[#allocation6 + $0x5e4] sm:$0xff]
    %v301 = vld [vmem:[#allocation6 + $0x5ec] sm:$0xf]
    %v302 = vld [vmem:[#allocation6 + $0x5f0] sm:$0xff]
    %v303 = vld [vmem:[#allocation6 + $0x5f8] sm:$0xff]
    %v304 = vld [vmem:[#allocation6 + $0x600] sm:$0xf]
    %v305 = vld [vmem:[#allocation6 + $0x604] sm:$0xff]
    %v306 = vld [vmem:[#allocation6 + $0x60c] sm:$0xff]
    %v307 = vld [vmem:[#allocation6 + $0x614] sm:$0xf]
    %v308 = vld [vmem:[#allocation6 + $0x618] sm:$0xff]
    %v309 = vld [vmem:[#allocation6 + $0x620] sm:$0xff]
    %v310 = vld [vmem:[#allocation6 + $0x628] sm:$0xf]
    %v311 = vld [vmem:[#allocation6 + $0x62c] sm:$0xff]
    %v312 = vld [vmem:[#allocation6 + $0x634] sm:$0xff]
    %v313 = vld [vmem:[#allocation6 + $0x63c] sm:$0xf]
    %v320 = vunpack.c.l.b16 %v58
    %v321 = vunpack.c.h.b16 %v58
    %v322 = vunpack.c.l.b16 %v59
    %v323 = vunpack.c.h.b16 %v59
    %v324 = vunpack.c.l.b16 %v60
    %v325 = vunpack.c.l.b16 %v61
    %v326 = vunpack.c.h.b16 %v61
    %v327 = vunpack.c.l.b16 %v62
    %v328 = vunpack.c.h.b16 %v62
    %v329 = vunpack.c.l.b16 %v63
    %v330 = vpack.c.b16 %v325, %v320
    %v331 = vpack.c.b16 %v326, %v321
    %v332 = vpack.c.b16 %v327, %v322
    %v333 = vpack.c.b16 %v328, %v323
    %v334 = vpack.c.b16 %v329, %v324
    %v580 = vunpack.c.l.b16 %v74
    %v581 = vunpack.c.h.b16 %v74
    %v582 = vunpack.c.l.b16 %v75
    %v583 = vunpack.c.h.b16 %v75
    %v584 = vunpack.c.l.b16 %v76
    %v585 = vunpack.c.l.b16 %v77
    %v586 = vunpack.c.h.b16 %v77
    %v587 = vunpack.c.l.b16 %v78
    %v588 = vunpack.c.h.b16 %v78
    %v589 = vunpack.c.l.b16 %v79
    %v590 = vunpack.c.l.b16 %v80
    %v591 = vunpack.c.h.b16 %v80
    %v592 = vunpack.c.l.b16 %v81
    %v593 = vunpack.c.h.b16 %v81
    %v594 = vunpack.c.l.b16 %v82
    %v595 = vunpack.c.l.b16 %v83
    %v596 = vunpack.c.h.b16 %v83
    %v597 = vunpack.c.l.b16 %v84
    %v598 = vunpack.c.h.b16 %v84
    %v599 = vunpack.c.l.b16 %v85
    %v600 = vunpack.c.l.b16 %v86
    %v601 = vunpack.c.h.b16 %v86
    %v602 = vunpack.c.l.b16 %v87
    %v603 = vunpack.c.h.b16 %v87
    %v604 = vunpack.c.l.b16 %v88
    %v605 = vunpack.c.l.b16 %v89
    %v606 = vunpack.c.h.b16 %v89
    %v607 = vunpack.c.l.b16 %v90
    %v608 = vunpack.c.h.b16 %v90
    %v609 = vunpack.c.l.b16 %v91
    %v610 = vunpack.c.l.b16 %v92
    %v611 = vunpack.c.h.b16 %v92
    %v612 = vunpack.c.l.b16 %v93
    %v613 = vunpack.c.h.b16 %v93
    %v614 = vunpack.c.l.b16 %v94
    %v615 = vunpack.c.l.b16 %v95
    %v616 = vunpack.c.h.b16 %v95
    %v617 = vunpack.c.l.b16 %v96
    %v618 = vunpack.c.h.b16 %v96
    %v619 = vunpack.c.l.b16 %v97
    %v620 = vunpack.c.l.b16 %v98
    %v621 = vunpack.c.h.b16 %v98
    %v622 = vunpack.c.l.b16 %v99
    %v623 = vunpack.c.h.b16 %v99
    %v624 = vunpack.c.l.b16 %v100
    %v625 = vunpack.c.l.b16 %v101
    %v626 = vunpack.c.h.b16 %v101
    %v627 = vunpack.c.l.b16 %v102
    %v628 = vunpack.c.h.b16 %v102
    %v629 = vunpack.c.l.b16 %v103
    %v630 = vunpack.c.l.b16 %v104
    %v631 = vunpack.c.h.b16 %v104
    %v632 = vunpack.c.l.b16 %v105
    %v633 = vunpack.c.h.b16 %v105
    %v634 = vunpack.c.l.b16 %v106
    %v635 = vunpack.c.l.b16 %v107
    %v636 = vunpack.c.h.b16 %v107
    %v637 = vunpack.c.l.b16 %v108
    %v638 = vunpack.c.h.b16 %v108
    %v639 = vunpack.c.l.b16 %v109
    %v640 = vunpack.c.l.b16 %v110
    %v641 = vunpack.c.h.b16 %v110
    %v642 = vunpack.c.l.b16 %v111
    %v643 = vunpack.c.h.b16 %v111
    %v644 = vunpack.c.l.b16 %v112
    %v645 = vunpack.c.l.b16 %v113
    %v646 = vunpack.c.h.b16 %v113
    %v647 = vunpack.c.l.b16 %v114
    %v648 = vunpack.c.h.b16 %v114
    %v649 = vunpack.c.l.b16 %v115
    %v650 = vunpack.c.l.b16 %v116
    %v651 = vunpack.c.h.b16 %v116
    %v652 = vunpack.c.l.b16 %v117
    %v653 = vunpack.c.h.b16 %v117
    %v654 = vunpack.c.l.b16 %v118
    %v655 = vunpack.c.l.b16 %v119
    %v656 = vunpack.c.h.b16 %v119
    %v657 = vunpack.c.l.b16 %v120
    %v658 = vunpack.c.h.b16 %v120
    %v659 = vunpack.c.l.b16 %v121
    %v660 = vunpack.c.l.b16 %v122
    %v661 = vunpack.c.h.b16 %v122
    %v662 = vunpack.c.l.b16 %v123
    %v663 = vunpack.c.h.b16 %v123
    %v664 = vunpack.c.l.b16 %v124
    %v665 = vunpack.c.l.b16 %v125
    %v666 = vunpack.c.h.b16 %v125
    %v667 = vunpack.c.l.b16 %v126
    %v668 = vunpack.c.h.b16 %v126
    %v669 = vunpack.c.l.b16 %v127
    %v670 = vunpack.c.l.b16 %v128
    %v671 = vunpack.c.h.b16 %v128
    %v672 = vunpack.c.l.b16 %v129
    %v673 = vunpack.c.h.b16 %v129
    %v674 = vunpack.c.l.b16 %v130
    %v675 = vunpack.c.l.b16 %v131
    %v676 = vunpack.c.h.b16 %v131
    %v677 = vunpack.c.l.b16 %v132
    %v678 = vunpack.c.h.b16 %v132
    %v679 = vunpack.c.l.b16 %v133
    %v680 = vunpack.c.l.b16 %v134
    %v681 = vunpack.c.h.b16 %v134
    %v682 = vunpack.c.l.b16 %v135
    %v683 = vunpack.c.h.b16 %v135
    %v684 = vunpack.c.l.b16 %v136
    %v685 = vunpack.c.l.b16 %v137
    %v686 = vunpack.c.h.b16 %v137
    %v687 = vunpack.c.l.b16 %v138
    %v688 = vunpack.c.h.b16 %v138
    %v689 = vunpack.c.l.b16 %v139
    %v690 = vunpack.c.l.b16 %v140
    %v691 = vunpack.c.h.b16 %v140
    %v692 = vunpack.c.l.b16 %v141
    %v693 = vunpack.c.h.b16 %v141
    %v694 = vunpack.c.l.b16 %v142
    %v695 = vunpack.c.l.b16 %v143
    %v696 = vunpack.c.h.b16 %v143
    %v697 = vunpack.c.l.b16 %v144
    %v698 = vunpack.c.h.b16 %v144
    %v699 = vunpack.c.l.b16 %v145
    %v700 = vunpack.c.l.b16 %v146
    %v701 = vunpack.c.h.b16 %v146
    %v702 = vunpack.c.l.b16 %v147
    %v703 = vunpack.c.h.b16 %v147
    %v704 = vunpack.c.l.b16 %v148
    %v705 = vunpack.c.l.b16 %v149
    %v706 = vunpack.c.h.b16 %v149
    %v707 = vunpack.c.l.b16 %v150
    %v708 = vunpack.c.h.b16 %v150
    %v709 = vunpack.c.l.b16 %v151
    %v710 = vunpack.c.l.b16 %v152
    %v711 = vunpack.c.h.b16 %v152
    %v712 = vunpack.c.l.b16 %v153
    %v713 = vunpack.c.h.b16 %v153
    %v714 = vunpack.c.l.b16 %v154
    %v715 = vunpack.c.l.b16 %v155
    %v716 = vunpack.c.h.b16 %v155
    %v717 = vunpack.c.l.b16 %v156
    %v718 = vunpack.c.h.b16 %v156
    %v719 = vunpack.c.l.b16 %v157
    %v720 = vunpack.c.l.b16 %v158
    %v721 = vunpack.c.h.b16 %v158
    %v722 = vunpack.c.l.b16 %v159
    %v723 = vunpack.c.h.b16 %v159
    %v724 = vunpack.c.l.b16 %v160
    %v725 = vunpack.c.l.b16 %v161
    %v726 = vunpack.c.h.b16 %v161
    %v727 = vunpack.c.l.b16 %v162
    %v728 = vunpack.c.h.b16 %v162
    %v729 = vunpack.c.l.b16 %v163
    %v730 = vunpack.c.l.b16 %v164
    %v731 = vunpack.c.h.b16 %v164
    %v732 = vunpack.c.l.b16 %v165
    %v733 = vunpack.c.h.b16 %v165
    %v734 = vunpack.c.l.b16 %v166
    %v735 = vunpack.c.l.b16 %v167
    %v736 = vunpack.c.h.b16 %v167
    %v737 = vunpack.c.l.b16 %v168
    %v738 = vunpack.c.h.b16 %v168
    %v739 = vunpack.c.l.b16 %v169
    %v740 = vunpack.c.l.b16 %v170
    %v741 = vunpack.c.h.b16 %v170
    %v742 = vunpack.c.l.b16 %v171
    %v743 = vunpack.c.h.b16 %v171
    %v744 = vunpack.c.l.b16 %v172
    %v745 = vunpack.c.l.b16 %v173
    %v746 = vunpack.c.h.b16 %v173
    %v747 = vunpack.c.l.b16 %v174
    %v748 = vunpack.c.h.b16 %v174
    %v749 = vunpack.c.l.b16 %v175
    %v750 = vunpack.c.l.b16 %v176
    %v751 = vunpack.c.h.b16 %v176
    %v752 = vunpack.c.l.b16 %v177
    %v753 = vunpack.c.h.b16 %v177
    %v754 = vunpack.c.l.b16 %v178
    %v755 = vunpack.c.l.b16 %v179
    %v756 = vunpack.c.h.b16 %v179
    %v757 = vunpack.c.l.b16 %v180
    %v758 = vunpack.c.h.b16 %v180
    %v759 = vunpack.c.l.b16 %v181
    %v760 = vunpack.c.l.b16 %v182
    %v761 = vunpack.c.h.b16 %v182
    %v762 = vunpack.c.l.b16 %v183
    %v763 = vunpack.c.h.b16 %v183
    %v764 = vunpack.c.l.b16 %v184
    %v765 = vunpack.c.l.b16 %v185
    %v766 = vunpack.c.h.b16 %v185
    %v767 = vunpack.c.l.b16 %v186
    %v768 = vunpack.c.h.b16 %v186
    %v769 = vunpack.c.l.b16 %v187
    %v770 = vunpack.c.l.b16 %v188
    %v771 = vunpack.c.h.b16 %v188
    %v772 = vunpack.c.l.b16 %v189
    %v773 = vunpack.c.h.b16 %v189
    %v774 = vunpack.c.l.b16 %v190
    %v775 = vunpack.c.l.b16 %v191
    %v776 = vunpack.c.h.b16 %v191
    %v777 = vunpack.c.l.b16 %v192
    %v778 = vunpack.c.h.b16 %v192
    %v779 = vunpack.c.l.b16 %v193
    %v780 = vunpack.c.l.b16 %v194
    %v781 = vunpack.c.h.b16 %v194
    %v782 = vunpack.c.l.b16 %v195
    %v783 = vunpack.c.h.b16 %v195
    %v784 = vunpack.c.l.b16 %v196
    %v785 = vunpack.c.l.b16 %v197
    %v786 = vunpack.c.h.b16 %v197
    %v787 = vunpack.c.l.b16 %v198
    %v788 = vunpack.c.h.b16 %v198
    %v789 = vunpack.c.l.b16 %v199
    %v790 = vunpack.c.l.b16 %v200
    %v791 = vunpack.c.h.b16 %v200
    %v792 = vunpack.c.l.b16 %v201
    %v793 = vunpack.c.h.b16 %v201
    %v794 = vunpack.c.l.b16 %v202
    %v795 = vunpack.c.l.b16 %v203
    %v796 = vunpack.c.h.b16 %v203
    %v797 = vunpack.c.l.b16 %v204
    %v798 = vunpack.c.h.b16 %v204
    %v799 = vunpack.c.l.b16 %v205
    %v800 = vunpack.c.l.b16 %v206
    %v801 = vunpack.c.h.b16 %v206
    %v802 = vunpack.c.l.b16 %v207
    %v803 = vunpack.c.h.b16 %v207
    %v804 = vunpack.c.l.b16 %v208
    %v805 = vunpack.c.l.b16 %v209
    %v806 = vunpack.c.h.b16 %v209
    %v807 = vunpack.c.l.b16 %v210
    %v808 = vunpack.c.h.b16 %v210
    %v809 = vunpack.c.l.b16 %v211
    %v810 = vunpack.c.l.b16 %v212
    %v811 = vunpack.c.h.b16 %v212
    %v812 = vunpack.c.l.b16 %v213
    %v813 = vunpack.c.h.b16 %v213
    %v814 = vunpack.c.l.b16 %v214
    %v815 = vunpack.c.l.b16 %v215
    %v816 = vunpack.c.h.b16 %v215
    %v817 = vunpack.c.l.b16 %v216
    %v818 = vunpack.c.h.b16 %v216
    %v819 = vunpack.c.l.b16 %v217
    %v820 = vunpack.c.l.b16 %v218
    %v821 = vunpack.c.h.b16 %v218
    %v822 = vunpack.c.l.b16 %v219
    %v823 = vunpack.c.h.b16 %v219
    %v824 = vunpack.c.l.b16 %v220
    %v825 = vunpack.c.l.b16 %v221
    %v826 = vunpack.c.h.b16 %v221
    %v827 = vunpack.c.l.b16 %v222
    %v828 = vunpack.c.h.b16 %v222
    %v829 = vunpack.c.l.b16 %v223
    %v830 = vunpack.c.l.b16 %v224
    %v831 = vunpack.c.h.b16 %v224
    %v832 = vunpack.c.l.b16 %v225
    %v833 = vunpack.c.h.b16 %v225
    %v834 = vunpack.c.l.b16 %v226
    %v835 = vunpack.c.l.b16 %v227
    %v836 = vunpack.c.h.b16 %v227
    %v837 = vunpack.c.l.b16 %v228
    %v838 = vunpack.c.h.b16 %v228
    %v839 = vunpack.c.l.b16 %v229
    %v840 = vunpack.c.l.b16 %v230
    %v841 = vunpack.c.h.b16 %v230
    %v842 = vunpack.c.l.b16 %v231
    %v843 = vunpack.c.h.b16 %v231
    %v844 = vunpack.c.l.b16 %v232
    %v845 = vunpack.c.l.b16 %v233
    %v846 = vunpack.c.h.b16 %v233
    %v847 = vunpack.c.l.b16 %v234
    %v848 = vunpack.c.h.b16 %v234
    %v849 = vunpack.c.l.b16 %v235
    %v850 = vunpack.c.l.b16 %v236
    %v851 = vunpack.c.h.b16 %v236
    %v852 = vunpack.c.l.b16 %v237
    %v853 = vunpack.c.h.b16 %v237
    %v854 = vunpack.c.l.b16 %v238
    %v855 = vunpack.c.l.b16 %v239
    %v856 = vunpack.c.h.b16 %v239
    %v857 = vunpack.c.l.b16 %v240
    %v858 = vunpack.c.h.b16 %v240
    %v859 = vunpack.c.l.b16 %v241
    %v860 = vunpack.c.l.b16 %v242
    %v861 = vunpack.c.h.b16 %v242
    %v862 = vunpack.c.l.b16 %v243
    %v863 = vunpack.c.h.b16 %v243
    %v864 = vunpack.c.l.b16 %v244
    %v865 = vunpack.c.l.b16 %v245
    %v866 = vunpack.c.h.b16 %v245
    %v867 = vunpack.c.l.b16 %v246
    %v868 = vunpack.c.h.b16 %v246
    %v869 = vunpack.c.l.b16 %v247
    %v870 = vunpack.c.l.b16 %v248
    %v871 = vunpack.c.h.b16 %v248
    %v872 = vunpack.c.l.b16 %v249
    %v873 = vunpack.c.h.b16 %v249
    %v874 = vunpack.c.l.b16 %v250
    %v875 = vunpack.c.l.b16 %v251
    %v876 = vunpack.c.h.b16 %v251
    %v877 = vunpack.c.l.b16 %v252
    %v878 = vunpack.c.h.b16 %v252
    %v879 = vunpack.c.l.b16 %v253
    %v880 = vunpack.c.l.b16 %v254
    %v881 = vunpack.c.h.b16 %v254
    %v882 = vunpack.c.l.b16 %v255
    %v883 = vunpack.c.h.b16 %v255
    %v884 = vunpack.c.l.b16 %v256
    %v885 = vunpack.c.l.b16 %v257
    %v886 = vunpack.c.h.b16 %v257
    %v887 = vunpack.c.l.b16 %v258
    %v888 = vunpack.c.h.b16 %v258
    %v889 = vunpack.c.l.b16 %v259
    %v890 = vunpack.c.l.b16 %v260
    %v891 = vunpack.c.h.b16 %v260
    %v892 = vunpack.c.l.b16 %v261
    %v893 = vunpack.c.h.b16 %v261
    %v894 = vunpack.c.l.b16 %v262
    %v895 = vunpack.c.l.b16 %v263
    %v896 = vunpack.c.h.b16 %v263
    %v897 = vunpack.c.l.b16 %v264
    %v898 = vunpack.c.h.b16 %v264
    %v899 = vunpack.c.l.b16 %v265
    %v900 = vunpack.c.l.b16 %v266
    %v901 = vunpack.c.h.b16 %v266
    %v902 = vunpack.c.l.b16 %v267
    %v903 = vunpack.c.h.b16 %v267
    %v904 = vunpack.c.l.b16 %v268
    %v905 = vunpack.c.l.b16 %v269
    %v906 = vunpack.c.h.b16 %v269
    %v907 = vunpack.c.l.b16 %v270
    %v908 = vunpack.c.h.b16 %v270
    %v909 = vunpack.c.l.b16 %v271
    %v910 = vunpack.c.l.b16 %v272
    %v911 = vunpack.c.h.b16 %v272
    %v912 = vunpack.c.l.b16 %v273
    %v913 = vunpack.c.h.b16 %v273
    %v914 = vunpack.c.l.b16 %v274
    %v915 = vunpack.c.l.b16 %v275
    %v916 = vunpack.c.h.b16 %v275
    %v917 = vunpack.c.l.b16 %v276
    %v918 = vunpack.c.h.b16 %v276
    %v919 = vunpack.c.l.b16 %v277
    %v920 = vunpack.c.l.b16 %v278
    %v921 = vunpack.c.h.b16 %v278
    %v922 = vunpack.c.l.b16 %v279
    %v923 = vunpack.c.h.b16 %v279
    %v924 = vunpack.c.l.b16 %v280
    %v925 = vunpack.c.l.b16 %v281
    %v926 = vunpack.c.h.b16 %v281
    %v927 = vunpack.c.l.b16 %v282
    %v928 = vunpack.c.h.b16 %v282
    %v929 = vunpack.c.l.b16 %v283
    %v930 = vunpack.c.l.b16 %v284
    %v931 = vunpack.c.h.b16 %v284
    %v932 = vunpack.c.l.b16 %v285
    %v933 = vunpack.c.h.b16 %v285
    %v934 = vunpack.c.l.b16 %v286
    %v935 = vunpack.c.l.b16 %v287
    %v936 = vunpack.c.h.b16 %v287
    %v937 = vunpack.c.l.b16 %v288
    %v938 = vunpack.c.h.b16 %v288
    %v939 = vunpack.c.l.b16 %v289
    %v940 = vunpack.c.l.b16 %v290
    %v941 = vunpack.c.h.b16 %v290
    %v942 = vunpack.c.l.b16 %v291
    %v943 = vunpack.c.h.b16 %v291
    %v944 = vunpack.c.l.b16 %v292
    %v945 = vunpack.c.l.b16 %v293
    %v946 = vunpack.c.h.b16 %v293
    %v947 = vunpack.c.l.b16 %v294
    %v948 = vunpack.c.h.b16 %v294
    %v949 = vunpack.c.l.b16 %v295
    %v950 = vunpack.c.l.b16 %v296
    %v951 = vunpack.c.h.b16 %v296
    %v952 = vunpack.c.l.b16 %v297
    %v953 = vunpack.c.h.b16 %v297
    %v954 = vunpack.c.l.b16 %v298
    %v955 = vunpack.c.l.b16 %v299
    %v956 = vunpack.c.h.b16 %v299
    %v957 = vunpack.c.l.b16 %v300
    %v958 = vunpack.c.h.b16 %v300
    %v959 = vunpack.c.l.b16 %v301
    %v960 = vunpack.c.l.b16 %v302
    %v961 = vunpack.c.h.b16 %v302
    %v962 = vunpack.c.l.b16 %v303
    %v963 = vunpack.c.h.b16 %v303
    %v964 = vunpack.c.l.b16 %v304
    %v965 = vunpack.c.l.b16 %v305
    %v966 = vunpack.c.h.b16 %v305
    %v967 = vunpack.c.l.b16 %v306
    %v968 = vunpack.c.h.b16 %v306
    %v969 = vunpack.c.l.b16 %v307
    %v970 = vunpack.c.l.b16 %v308
    %v971 = vunpack.c.h.b16 %v308
    %v972 = vunpack.c.l.b16 %v309
    %v973 = vunpack.c.h.b16 %v309
    %v974 = vunpack.c.l.b16 %v310
    %v975 = vunpack.c.l.b16 %v311
    %v976 = vunpack.c.h.b16 %v311
    %v977 = vunpack.c.l.b16 %v312
    %v978 = vunpack.c.h.b16 %v312
    %v979 = vunpack.c.l.b16 %v313
    %v980 = vpack.c.b16 %v585, %v580
    %v981 = vpack.c.b16 %v586, %v581
    %v982 = vpack.c.b16 %v587, %v582
    %v983 = vpack.c.b16 %v588, %v583
    %v984 = vpack.c.b16 %v589, %v584
    %v985 = vpack.c.b16 %v595, %v590
    %v986 = vpack.c.b16 %v596, %v591
    %v987 = vpack.c.b16 %v597, %v592
    %v988 = vpack.c.b16 %v598, %v593
    %v989 = vpack.c.b16 %v599, %v594
    %v990 = vpack.c.b16 %v605, %v600
    %v991 = vpack.c.b16 %v606, %v601
    %v992 = vpack.c.b16 %v607, %v602
    %v993 = vpack.c.b16 %v608, %v603
    %v994 = vpack.c.b16 %v609, %v604
    %v995 = vpack.c.b16 %v615, %v610
    %v996 = vpack.c.b16 %v616, %v611
    %v997 = vpack.c.b16 %v617, %v612
    %v998 = vpack.c.b16 %v618, %v613
    %v999 = vpack.c.b16 %v619, %v614
    %v1000 = vpack.c.b16 %v625, %v620
    %v1001 = vpack.c.b16 %v626, %v621
    %v1002 = vpack.c.b16 %v627, %v622
    %v1003 = vpack.c.b16 %v628, %v623
    %v1004 = vpack.c.b16 %v629, %v624
    %v1005 = vpack.c.b16 %v635, %v630
    %v1006 = vpack.c.b16 %v636, %v631
    %v1007 = vpack.c.b16 %v637, %v632
    %v1008 = vpack.c.b16 %v638, %v633
    %v1009 = vpack.c.b16 %v639, %v634
    %v1010 = vpack.c.b16 %v645, %v640
    %v1011 = vpack.c.b16 %v646, %v641
    %v1012 = vpack.c.b16 %v647, %v642
    %v1013 = vpack.c.b16 %v648, %v643
    %v1014 = vpack.c.b16 %v649, %v644
    %v1015 = vpack.c.b16 %v655, %v650
    %v1016 = vpack.c.b16 %v656, %v651
    %v1017 = vpack.c.b16 %v657, %v652
    %v1018 = vpack.c.b16 %v658, %v653
    %v1019 = vpack.c.b16 %v659, %v654
    %v1020 = vpack.c.b16 %v665, %v660
    %v1021 = vpack.c.b16 %v666, %v661
    %v1022 = vpack.c.b16 %v667, %v662
    %v1023 = vpack.c.b16 %v668, %v663
    %v1024 = vpack.c.b16 %v669, %v664
    %v1025 = vpack.c.b16 %v675, %v670
    %v1026 = vpack.c.b16 %v676, %v671
    %v1027 = vpack.c.b16 %v677, %v672
    %v1028 = vpack.c.b16 %v678, %v673
    %v1029 = vpack.c.b16 %v679, %v674
    %v1030 = vpack.c.b16 %v685, %v680
    %v1031 = vpack.c.b16 %v686, %v681
    %v1032 = vpack.c.b16 %v687, %v682
    %v1033 = vpack.c.b16 %v688, %v683
    %v1034 = vpack.c.b16 %v689, %v684
    %v1035 = vpack.c.b16 %v695, %v690
    %v1036 = vpack.c.b16 %v696, %v691
    %v1037 = vpack.c.b16 %v697, %v692
    %v1038 = vpack.c.b16 %v698, %v693
    %v1039 = vpack.c.b16 %v699, %v694
    %v1040 = vpack.c.b16 %v705, %v700
    %v1041 = vpack.c.b16 %v706, %v701
    %v1042 = vpack.c.b16 %v707, %v702
    %v1043 = vpack.c.b16 %v708, %v703
    %v1044 = vpack.c.b16 %v709, %v704
    %v1045 = vpack.c.b16 %v715, %v710
    %v1046 = vpack.c.b16 %v716, %v711
    %v1047 = vpack.c.b16 %v717, %v712
    %v1048 = vpack.c.b16 %v718, %v713
    %v1049 = vpack.c.b16 %v719, %v714
    %v1050 = vpack.c.b16 %v725, %v720
    %v1051 = vpack.c.b16 %v726, %v721
    %v1052 = vpack.c.b16 %v727, %v722
    %v1053 = vpack.c.b16 %v728, %v723
    %v1054 = vpack.c.b16 %v729, %v724
    %v1055 = vpack.c.b16 %v735, %v730
    %v1056 = vpack.c.b16 %v736, %v731
    %v1057 = vpack.c.b16 %v737, %v732
    %v1058 = vpack.c.b16 %v738, %v733
    %v1059 = vpack.c.b16 %v739, %v734
    %v1060 = vpack.c.b16 %v745, %v740
    %v1061 = vpack.c.b16 %v746, %v741
    %v1062 = vpack.c.b16 %v747, %v742
    %v1063 = vpack.c.b16 %v748, %v743
    %v1064 = vpack.c.b16 %v749, %v744
    %v1065 = vpack.c.b16 %v755, %v750
    %v1066 = vpack.c.b16 %v756, %v751
    %v1067 = vpack.c.b16 %v757, %v752
    %v1068 = vpack.c.b16 %v758, %v753
    %v1069 = vpack.c.b16 %v759, %v754
    %v1070 = vpack.c.b16 %v765, %v760
    %v1071 = vpack.c.b16 %v766, %v761
    %v1072 = vpack.c.b16 %v767, %v762
    %v1073 = vpack.c.b16 %v768, %v763
    %v1074 = vpack.c.b16 %v769, %v764
    %v1075 = vpack.c.b16 %v775, %v770
    %v1076 = vpack.c.b16 %v776, %v771
    %v1077 = vpack.c.b16 %v777, %v772
    %v1078 = vpack.c.b16 %v778, %v773
    %v1079 = vpack.c.b16 %v779, %v774
    %v1080 = vpack.c.b16 %v785, %v780
    %v1081 = vpack.c.b16 %v786, %v781
    %v1082 = vpack.c.b16 %v787, %v782
    %v1083 = vpack.c.b16 %v788, %v783
    %v1084 = vpack.c.b16 %v789, %v784
    %v1085 = vpack.c.b16 %v795, %v790
    %v1086 = vpack.c.b16 %v796, %v791
    %v1087 = vpack.c.b16 %v797, %v792
    %v1088 = vpack.c.b16 %v798, %v793
    %v1089 = vpack.c.b16 %v799, %v794
    %v1090 = vpack.c.b16 %v805, %v800
    %v1091 = vpack.c.b16 %v806, %v801
    %v1092 = vpack.c.b16 %v807, %v802
    %v1093 = vpack.c.b16 %v808, %v803
    %v1094 = vpack.c.b16 %v809, %v804
    %v1095 = vpack.c.b16 %v815, %v810
    %v1096 = vpack.c.b16 %v816, %v811
    %v1097 = vpack.c.b16 %v817, %v812
    %v1098 = vpack.c.b16 %v818, %v813
    %v1099 = vpack.c.b16 %v819, %v814
    %v1100 = vpack.c.b16 %v825, %v820
    %v1101 = vpack.c.b16 %v826, %v821
    %v1102 = vpack.c.b16 %v827, %v822
    %v1103 = vpack.c.b16 %v828, %v823
    %v1104 = vpack.c.b16 %v829, %v824
    %v1105 = vpack.c.b16 %v835, %v830
    %v1106 = vpack.c.b16 %v836, %v831
    %v1107 = vpack.c.b16 %v837, %v832
    %v1108 = vpack.c.b16 %v838, %v833
    %v1109 = vpack.c.b16 %v839, %v834
    %v1110 = vpack.c.b16 %v845, %v840
    %v1111 = vpack.c.b16 %v846, %v841
    %v1112 = vpack.c.b16 %v847, %v842
    %v1113 = vpack.c.b16 %v848, %v843
    %v1114 = vpack.c.b16 %v849, %v844
    %v1115 = vpack.c.b16 %v855, %v850
    %v1116 = vpack.c.b16 %v856, %v851
    %v1117 = vpack.c.b16 %v857, %v852
    %v1118 = vpack.c.b16 %v858, %v853
    %v1119 = vpack.c.b16 %v859, %v854
    %v1120 = vpack.c.b16 %v865, %v860
    %v1121 = vpack.c.b16 %v866, %v861
    %v1122 = vpack.c.b16 %v867, %v862
    %v1123 = vpack.c.b16 %v868, %v863
    %v1124 = vpack.c.b16 %v869, %v864
    %v1125 = vpack.c.b16 %v875, %v870
    %v1126 = vpack.c.b16 %v876, %v871
    %v1127 = vpack.c.b16 %v877, %v872
    %v1128 = vpack.c.b16 %v878, %v873
    %v1129 = vpack.c.b16 %v879, %v874
    %v1130 = vpack.c.b16 %v885, %v880
    %v1131 = vpack.c.b16 %v886, %v881
    %v1132 = vpack.c.b16 %v887, %v882
    %v1133 = vpack.c.b16 %v888, %v883
    %v1134 = vpack.c.b16 %v889, %v884
    %v1135 = vpack.c.b16 %v895, %v890
    %v1136 = vpack.c.b16 %v896, %v891
    %v1137 = vpack.c.b16 %v897, %v892
    %v1138 = vpack.c.b16 %v898, %v893
    %v1139 = vpack.c.b16 %v899, %v894
    %v1140 = vpack.c.b16 %v905, %v900
    %v1141 = vpack.c.b16 %v906, %v901
    %v1142 = vpack.c.b16 %v907, %v902
    %v1143 = vpack.c.b16 %v908, %v903
    %v1144 = vpack.c.b16 %v909, %v904
    %v1145 = vpack.c.b16 %v915, %v910
    %v1146 = vpack.c.b16 %v916, %v911
    %v1147 = vpack.c.b16 %v917, %v912
    %v1148 = vpack.c.b16 %v918, %v913
    %v1149 = vpack.c.b16 %v919, %v914
    %v1150 = vpack.c.b16 %v925, %v920
    %v1151 = vpack.c.b16 %v926, %v921
    %v1152 = vpack.c.b16 %v927, %v922
    %v1153 = vpack.c.b16 %v928, %v923
    %v1154 = vpack.c.b16 %v929, %v924
    %v1155 = vpack.c.b16 %v935, %v930
    %v1156 = vpack.c.b16 %v936, %v931
    %v1157 = vpack.c.b16 %v937, %v932
    %v1158 = vpack.c.b16 %v938, %v933
    %v1159 = vpack.c.b16 %v939, %v934
    %v1160 = vpack.c.b16 %v945, %v940
    %v1161 = vpack.c.b16 %v946, %v941
    %v1162 = vpack.c.b16 %v947, %v942
    %v1163 = vpack.c.b16 %v948, %v943
    %v1164 = vpack.c.b16 %v949, %v944
    %v1165 = vpack.c.b16 %v955, %v950
    %v1166 = vpack.c.b16 %v956, %v951
    %v1167 = vpack.c.b16 %v957, %v952
    %v1168 = vpack.c.b16 %v958, %v953
    %v1169 = vpack.c.b16 %v959, %v954
    %v1170 = vpack.c.b16 %v965, %v960
    %v1171 = vpack.c.b16 %v966, %v961
    %v1172 = vpack.c.b16 %v967, %v962
    %v1173 = vpack.c.b16 %v968, %v963
    %v1174 = vpack.c.b16 %v969, %v964
    %v1175 = vpack.c.b16 %v975, %v970
    %v1176 = vpack.c.b16 %v976, %v971
    %v1177 = vpack.c.b16 %v977, %v972
    %v1178 = vpack.c.b16 %v978, %v973
    %v1179 = vpack.c.b16 %v979, %v974
    %1380 = vmatprep.subr.bf16.mxu0 %v981
    %1381 = vmatpush1.bf16.xpose.msra.mxu0 %v980
    %1382 = vmatprep.subr.bf16.mxu0 %v986
    %1383 = vmatpush1.bf16.xpose.msra.mxu0 %v985
    %1384 = vmatprep.subr.bf16.mxu0 %v991
    %1385 = vmatpush1.bf16.xpose.msra.mxu0 %v990
    %1386 = vmatprep.subr.bf16.mxu0 %v996
    %1387 = vmatpush1.bf16.xpose.msra.mxu0 %v995
    %1388 = vmatprep.subr.bf16.mxu0 %v1001
    %1389 = vmatpush1.bf16.xpose.msra.mxu0 %v1000
    %1390 = vmatprep.subr.bf16.mxu0 %v1006
    %1391 = vmatpush1.bf16.xpose.msra.mxu0 %v1005
    %1392 = vmatprep.subr.bf16.mxu0 %v1011
    %1393 = vmatpush1.bf16.xpose.msra.mxu0 %v1010
    %1394 = vmatprep.subr.bf16.mxu0 %v1016
    %1395 = vmatpush1.bf16.xpose.msra.mxu0 %v1015
    %1396 = vmatprep.subr.bf16.mxu0 %v1021
    %1397 = vmatpush1.bf16.xpose.msra.mxu0 %v1020
    %1398 = vmatprep.subr.bf16.mxu0 %v1026
    %1399 = vmatpush1.bf16.xpose.msra.mxu0 %v1025
    %1400 = vmatprep.subr.bf16.mxu0 %v1031
    %1401 = vmatpush1.bf16.xpose.msra.mxu0 %v1030
    %1402 = vmatprep.subr.bf16.mxu0 %v1036
    %1403 = vmatpush1.bf16.xpose.msra.mxu0 %v1035
    %1404 = vmatprep.subr.bf16.mxu0 %v1041
    %1405 = vmatpush1.bf16.xpose.msra.mxu0 %v1040
    %1406 = vmatprep.subr.bf16.mxu0 %v1046
    %1407 = vmatpush1.bf16.xpose.msra.mxu0 %v1045
    %1408 = vmatprep.subr.bf16.mxu0 %v1051
    %1409 = vmatpush1.bf16.xpose.msra.mxu0 %v1050
    %1410 = vmatprep.subr.bf16.mxu0 %v1056
    %1411 = vmatpush1.bf16.xpose.msra.mxu0 %v1055
    %1412 = vmatprep.mubr.bf16.mxu0 %v331
    %1413 = vmatmul.mubr.bf16.gmra.mrb[0].mxu0 %v330
    %v1414 = vpop.f32.mrb[0].mxu0
    %v1415 = vadd.f32 0.0, %v1414
    %v1416 = vpop.f32.mrb[0].mxu0
    %v1417 = vadd.f32 0.0, %v1416
    %v1418 = vpop.f32.mrb[0].mxu0
    %v1419 = vadd.f32 0.0, %v1418
    %v1420 = vpop.f32.mrb[0].mxu0
    %v1421 = vadd.f32 0.0, %v1420
    %1422 = vdwg.mxu0
    %1423 = vmatprep.subr.bf16.mxu0 %v983
    %1424 = vmatpush1.bf16.xpose.msra.mxu0 %v982
    %1425 = vmatprep.subr.bf16.mxu0 %v988
    %1426 = vmatpush1.bf16.xpose.msra.mxu0 %v987
    %1427 = vmatprep.subr.bf16.mxu0 %v993
    %1428 = vmatpush1.bf16.xpose.msra.mxu0 %v992
    %1429 = vmatprep.subr.bf16.mxu0 %v998
    %1430 = vmatpush1.bf16.xpose.msra.mxu0 %v997
    %1431 = vmatprep.subr.bf16.mxu0 %v1003
    %1432 = vmatpush1.bf16.xpose.msra.mxu0 %v1002
    %1433 = vmatprep.subr.bf16.mxu0 %v1008
    %1434 = vmatpush1.bf16.xpose.msra.mxu0 %v1007
    %1435 = vmatprep.subr.bf16.mxu0 %v1013
    %1436 = vmatpush1.bf16.xpose.msra.mxu0 %v1012
    %1437 = vmatprep.subr.bf16.mxu0 %v1018
    %1438 = vmatpush1.bf16.xpose.msra.mxu0 %v1017
    %1439 = vmatprep.subr.bf16.mxu0 %v1023
    %1440 = vmatpush1.bf16.xpose.msra.mxu0 %v1022
    %1441 = vmatprep.subr.bf16.mxu0 %v1028
    %1442 = vmatpush1.bf16.xpose.msra.mxu0 %v1027
    %1443 = vmatprep.subr.bf16.mxu0 %v1033
    %1444 = vmatpush1.bf16.xpose.msra.mxu0 %v1032
    %1445 = vmatprep.subr.bf16.mxu0 %v1038
    %1446 = vmatpush1.bf16.xpose.msra.mxu0 %v1037
    %1447 = vmatprep.subr.bf16.mxu0 %v1043
    %1448 = vmatpush1.bf16.xpose.msra.mxu0 %v1042
    %1449 = vmatprep.subr.bf16.mxu0 %v1048
    %1450 = vmatpush1.bf16.xpose.msra.mxu0 %v1047
    %1451 = vmatprep.subr.bf16.mxu0 %v1053
    %1452 = vmatpush1.bf16.xpose.msra.mxu0 %v1052
    %1453 = vmatprep.subr.bf16.mxu0 %v1058
    %1454 = vmatpush1.bf16.xpose.msra.mxu0 %v1057
    %1455 = vmatprep.mubr.bf16.mxu0 %v333
    %1456 = vmatmul.mubr.bf16.gmra.mrb[0].mxu0 %v332
    %v1457 = vpop.f32.mrb[0].mxu0
    %v1458 = vadd.f32 %v1415, %v1457
    %v1459 = vpop.f32.mrb[0].mxu0
    %v1460 = vadd.f32 %v1417, %v1459
    %v1461 = vpop.f32.mrb[0].mxu0
    %v1462 = vadd.f32 %v1419, %v1461
    %v1463 = vpop.f32.mrb[0].mxu0
    %v1464 = vadd.f32 %v1421, %v1463
    %1465 = vdwg.mxu0
    %1466 = vmatprep.subr.bf16.mxu0 0
    %1467 = vmatpush1.bf16.xpose.msra.mxu0 %v984
    %1468 = vmatprep.subr.bf16.mxu0 0
    %1469 = vmatpush1.bf16.xpose.msra.mxu0 %v989
    %1470 = vmatprep.subr.bf16.mxu0 0
    %1471 = vmatpush1.bf16.xpose.msra.mxu0 %v994
    %1472 = vmatprep.subr.bf16.mxu0 0
    %1473 = vmatpush1.bf16.xpose.msra.mxu0 %v999
    %1474 = vmatprep.subr.bf16.mxu0 0
    %1475 = vmatpush1.bf16.xpose.msra.mxu0 %v1004
    %1476 = vmatprep.subr.bf16.mxu0 0
    %1477 = vmatpush1.bf16.xpose.msra.mxu0 %v1009
    %1478 = vmatprep.subr.bf16.mxu0 0
    %1479 = vmatpush1.bf16.xpose.msra.mxu0 %v1014
    %1480 = vmatprep.subr.bf16.mxu0 0
    %1481 = vmatpush1.bf16.xpose.msra.mxu0 %v1019
    %1482 = vmatprep.subr.bf16.mxu0 0
    %1483 = vmatpush1.bf16.xpose.msra.mxu0 %v1024
    %1484 = vmatprep.subr.bf16.mxu0 0
    %1485 = vmatpush1.bf16.xpose.msra.mxu0 %v1029
    %1486 = vmatprep.subr.bf16.mxu0 0
    %1487 = vmatpush1.bf16.xpose.msra.mxu0 %v1034
    %1488 = vmatprep.subr.bf16.mxu0 0
    %1489 = vmatpush1.bf16.xpose.msra.mxu0 %v1039
    %1490 = vmatprep.subr.bf16.mxu0 0
    %1491 = vmatpush1.bf16.xpose.msra.mxu0 %v1044
    %1492 = vmatprep.subr.bf16.mxu0 0
    %1493 = vmatpush1.bf16.xpose.msra.mxu0 %v1049
    %1494 = vmatprep.subr.bf16.mxu0 0
    %1495 = vmatpush1.bf16.xpose.msra.mxu0 %v1054
    %1496 = vmatprep.subr.bf16.mxu0 0
    %1497 = vmatpush1.bf16.xpose.msra.mxu0 %v1059
    %1498 = vmatprep.mubr.bf16.mxu0 0
    %1499 = vmatmul.mubr.bf16.gmra.mrb[0].mxu0 %v334
    %v1500 = vpop.f32.mrb[0].mxu0
    %v1501 = vadd.f32 %v1458, %v1500
    %v1502 = vpop.f32.mrb[0].mxu0
    %v1503 = vadd.f32 %v1460, %v1502
    %v1504 = vpop.f32.mrb[0].mxu0
    %v1505 = vadd.f32 %v1462, %v1504
    %v1506 = vpop.f32.mrb[0].mxu0
    %v1507 = vadd.f32 %v1464, %v1506
    %1508 = vdwg.mxu0
    %1509 = vmatprep.subr.bf16.mxu0 %v1061
    %1510 = vmatpush1.bf16.xpose.msra.mxu0 %v1060
    %1511 = vmatprep.subr.bf16.mxu0 %v1066
    %1512 = vmatpush1.bf16.xpose.msra.mxu0 %v1065
    %1513 = vmatprep.subr.bf16.mxu0 %v1071
    %1514 = vmatpush1.bf16.xpose.msra.mxu0 %v1070
    %1515 = vmatprep.subr.bf16.mxu0 %v1076
    %1516 = vmatpush1.bf16.xpose.msra.mxu0 %v1075
    %1517 = vmatprep.subr.bf16.mxu0 %v1081
    %1518 = vmatpush1.bf16.xpose.msra.mxu0 %v1080
    %1519 = vmatprep.subr.bf16.mxu0 %v1086
    %1520 = vmatpush1.bf16.xpose.msra.mxu0 %v1085
    %1521 = vmatprep.subr.bf16.mxu0 %v1091
    %1522 = vmatpush1.bf16.xpose.msra.mxu0 %v1090
    %1523 = vmatprep.subr.bf16.mxu0 %v1096
    %1524 = vmatpush1.bf16.xpose.msra.mxu0 %v1095
    %1525 = vmatprep.subr.bf16.mxu0 %v1101
    %1526 = vmatpush1.bf16.xpose.msra.mxu0 %v1100
    %1527 = vmatprep.subr.bf16.mxu0 %v1106
    %1528 = vmatpush1.bf16.xpose.msra.mxu0 %v1105
    %1529 = vmatprep.subr.bf16.mxu0 %v1111
    %1530 = vmatpush1.bf16.xpose.msra.mxu0 %v1110
    %1531 = vmatprep.subr.bf16.mxu0 %v1116
    %1532 = vmatpush1.bf16.xpose.msra.mxu0 %v1115
    %1533 = vmatprep.subr.bf16.mxu0 %v1121
    %1534 = vmatpush1.bf16.xpose.msra.mxu0 %v1120
    %1535 = vmatprep.subr.bf16.mxu0 %v1126
    %1536 = vmatpush1.bf16.xpose.msra.mxu0 %v1125
    %1537 = vmatprep.subr.bf16.mxu0 %v1131
    %1538 = vmatpush1.bf16.xpose.msra.mxu0 %v1130
    %1539 = vmatprep.subr.bf16.mxu0 %v1136
    %1540 = vmatpush1.bf16.xpose.msra.mxu0 %v1135
    %1541 = vmatprep.mubr.bf16.mxu0 %v331
    %1542 = vmatmul.mubr.bf16.gmra.mrb[0].mxu0 %v330
    %v1543 = vpop.f32.mrb[0].mxu0
    %v1544 = vadd.f32 0.0, %v1543
    %v1545 = vpop.f32.mrb[0].mxu0
    %v1546 = vadd.f32 0.0, %v1545
    %v1547 = vpop.f32.mrb[0].mxu0
    %v1548 = vadd.f32 0.0, %v1547
    %v1549 = vpop.f32.mrb[0].mxu0
    %v1550 = vadd.f32 0.0, %v1549
    %1551 = vdwg.mxu0
    %1552 = vmatprep.subr.bf16.mxu0 %v1063
    %1553 = vmatpush1.bf16.xpose.msra.mxu0 %v1062
    %1554 = vmatprep.subr.bf16.mxu0 %v1068
    %1555 = vmatpush1.bf16.xpose.msra.mxu0 %v1067
    %1556 = vmatprep.subr.bf16.mxu0 %v1073
    %1557 = vmatpush1.bf16.xpose.msra.mxu0 %v1072
    %1558 = vmatprep.subr.bf16.mxu0 %v1078
    %1559 = vmatpush1.bf16.xpose.msra.mxu0 %v1077
    %1560 = vmatprep.subr.bf16.mxu0 %v1083
    %1561 = vmatpush1.bf16.xpose.msra.mxu0 %v1082
    %1562 = vmatprep.subr.bf16.mxu0 %v1088
    %1563 = vmatpush1.bf16.xpose.msra.mxu0 %v1087
    %1564 = vmatprep.subr.bf16.mxu0 %v1093
    %1565 = vmatpush1.bf16.xpose.msra.mxu0 %v1092
    %1566 = vmatprep.subr.bf16.mxu0 %v1098
    %1567 = vmatpush1.bf16.xpose.msra.mxu0 %v1097
    %1568 = vmatprep.subr.bf16.mxu0 %v1103
    %1569 = vmatpush1.bf16.xpose.msra.mxu0 %v1102
    %1570 = vmatprep.subr.bf16.mxu0 %v1108
    %1571 = vmatpush1.bf16.xpose.msra.mxu0 %v1107
    %1572 = vmatprep.subr.bf16.mxu0 %v1113
    %1573 = vmatpush1.bf16.xpose.msra.mxu0 %v1112
    %1574 = vmatprep.subr.bf16.mxu0 %v1118
    %1575 = vmatpush1.bf16.xpose.msra.mxu0 %v1117
    %1576 = vmatprep.subr.bf16.mxu0 %v1123
    %1577 = vmatpush1.bf16.xpose.msra.mxu0 %v1122
    %1578 = vmatprep.subr.bf16.mxu0 %v1128
    %1579 = vmatpush1.bf16.xpose.msra.mxu0 %v1127
    %1580 = vmatprep.subr.bf16.mxu0 %v1133
    %1581 = vmatpush1.bf16.xpose.msra.mxu0 %v1132
    %1582 = vmatprep.subr.bf16.mxu0 %v1138
    %1583 = vmatpush1.bf16.xpose.msra.mxu0 %v1137
    %1584 = vmatprep.mubr.bf16.mxu0 %v333
    %1585 = vmatmul.mubr.bf16.gmra.mrb[0].mxu0 %v332
    %v1586 = vpop.f32.mrb[0].mxu0
    %v1587 = vadd.f32 %v1544, %v1586
    %v1588 = vpop.f32.mrb[0].mxu0
    %v1589 = vadd.f32 %v1546, %v1588
    %v1590 = vpop.f32.mrb[0].mxu0
    %v1591 = vadd.f32 %v1548, %v1590
    %v1592 = vpop.f32.mrb[0].mxu0
    %v1593 = vadd.f32 %v1550, %v1592
    %1594 = vdwg.mxu0
    %1595 = vmatprep.subr.bf16.mxu0 0
    %1596 = vmatpush1.bf16.xpose.msra.mxu0 %v1064
    %1597 = vmatprep.subr.bf16.mxu0 0
    %1598 = vmatpush1.bf16.xpose.msra.mxu0 %v1069
    %1599 = vmatprep.subr.bf16.mxu0 0
    %1600 = vmatpush1.bf16.xpose.msra.mxu0 %v1074
    %1601 = vmatprep.subr.bf16.mxu0 0
    %1602 = vmatpush1.bf16.xpose.msra.mxu0 %v1079
    %1603 = vmatprep.subr.bf16.mxu0 0
    %1604 = vmatpush1.bf16.xpose.msra.mxu0 %v1084
    %1605 = vmatprep.subr.bf16.mxu0 0
    %1606 = vmatpush1.bf16.xpose.msra.mxu0 %v1089
    %1607 = vmatprep.subr.bf16.mxu0 0
    %1608 = vmatpush1.bf16.xpose.msra.mxu0 %v1094
    %1609 = vmatprep.subr.bf16.mxu0 0
    %1610 = vmatpush1.bf16.xpose.msra.mxu0 %v1099
    %1611 = vmatprep.subr.bf16.mxu0 0
    %1612 = vmatpush1.bf16.xpose.msra.mxu0 %v1104
    %1613 = vmatprep.subr.bf16.mxu0 0
    %1614 = vmatpush1.bf16.xpose.msra.mxu0 %v1109
    %1615 = vmatprep.subr.bf16.mxu0 0
    %1616 = vmatpush1.bf16.xpose.msra.mxu0 %v1114
    %1617 = vmatprep.subr.bf16.mxu0 0
    %1618 = vmatpush1.bf16.xpose.msra.mxu0 %v1119
    %1619 = vmatprep.subr.bf16.mxu0 0
    %1620 = vmatpush1.bf16.xpose.msra.mxu0 %v1124
    %1621 = vmatprep.subr.bf16.mxu0 0
    %1622 = vmatpush1.bf16.xpose.msra.mxu0 %v1129
    %1623 = vmatprep.subr.bf16.mxu0 0
    %1624 = vmatpush1.bf16.xpose.msra.mxu0 %v1134
    %1625 = vmatprep.subr.bf16.mxu0 0
    %1626 = vmatpush1.bf16.xpose.msra.mxu0 %v1139
    %1627 = vmatprep.mubr.bf16.mxu0 0
    %1628 = vmatmul.mubr.bf16.gmra.mrb[0].mxu0 %v334
    %v1629 = vpop.f32.mrb[0].mxu0
    %v1630 = vadd.f32 %v1587, %v1629
    %v1631 = vpop.f32.mrb[0].mxu0
    %v1632 = vadd.f32 %v1589, %v1631
    %v1633 = vpop.f32.mrb[0].mxu0
    %v1634 = vadd.f32 %v1591, %v1633
    %v1635 = vpop.f32.mrb[0].mxu0
    %v1636 = vadd.f32 %v1593, %v1635
    %1637 = vdwg.mxu0
    %1638 = vmatprep.subr.bf16.mxu0 %v1141
    %1639 = vmatpush1.bf16.xpose.msra.mxu0 %v1140
    %1640 = vmatprep.subr.bf16.mxu0 %v1146
    %1641 = vmatpush1.bf16.xpose.msra.mxu0 %v1145
    %1642 = vmatprep.subr.bf16.mxu0 %v1151
    %1643 = vmatpush1.bf16.xpose.msra.mxu0 %v1150
    %1644 = vmatprep.subr.bf16.mxu0 %v1156
    %1645 = vmatpush1.bf16.xpose.msra.mxu0 %v1155
    %1646 = vmatprep.subr.bf16.mxu0 %v1161
    %1647 = vmatpush1.bf16.xpose.msra.mxu0 %v1160
    %1648 = vmatprep.subr.bf16.mxu0 %v1166
    %1649 = vmatpush1.bf16.xpose.msra.mxu0 %v1165
    %1650 = vmatprep.subr.bf16.mxu0 %v1171
    %1651 = vmatpush1.bf16.xpose.msra.mxu0 %v1170
    %1652 = vmatprep.subr.bf16.mxu0 %v1176
    %1653 = vmatpush1.bf16.xpose.msra.mxu0 %v1175
    %1654 = vmatprep.subr.bf16.mxu0 0
    %1655 = vmatpush1.bf16.xpose.msra.mxu0 0
    %1656 = vmatprep.subr.bf16.mxu0 0
    %1657 = vmatpush1.bf16.xpose.msra.mxu0 0
    %1658 = vmatprep.subr.bf16.mxu0 0
    %1659 = vmatpush1.bf16.xpose.msra.mxu0 0
    %1660 = vmatprep.subr.bf16.mxu0 0
    %1661 = vmatpush1.bf16.xpose.msra.mxu0 0
    %1662 = vmatprep.subr.bf16.mxu0 0
    %1663 = vmatpush1.bf16.xpose.msra.mxu0 0
    %1664 = vmatprep.subr.bf16.mxu0 0
    %1665 = vmatpush1.bf16.xpose.msra.mxu0 0
    %1666 = vmatprep.subr.bf16.mxu0 0
    %1667 = vmatpush1.bf16.xpose.msra.mxu0 0
    %1668 = vmatprep.subr.bf16.mxu0 0
    %1669 = vmatpush1.bf16.xpose.msra.mxu0 0
    %1670 = vmatprep.mubr.bf16.mxu0 %v331
    %1671 = vmatmul.mubr.bf16.gmra.mrb[0].mxu0 %v330
    %v1672 = vpop.f32.mrb[0].mxu0
    %v1673 = vadd.f32 0.0, %v1672
    %v1674 = vpop.f32.mrb[0].mxu0
    %v1675 = vpop.f32.mrb[0].mxu0
    %v1676 = vadd.f32 0.0, %v1675
    %v1677 = vpop.f32.mrb[0].mxu0
    %1678 = vdwg.mxu0
    %1679 = vmatprep.subr.bf16.mxu0 %v1143
    %1680 = vmatpush1.bf16.xpose.msra.mxu0 %v1142
    %1681 = vmatprep.subr.bf16.mxu0 %v1148
    %1682 = vmatpush1.bf16.xpose.msra.mxu0 %v1147
    %1683 = vmatprep.subr.bf16.mxu0 %v1153
    %1684 = vmatpush1.bf16.xpose.msra.mxu0 %v1152
    %1685 = vmatprep.subr.bf16.mxu0 %v1158
    %1686 = vmatpush1.bf16.xpose.msra.mxu0 %v1157
    %1687 = vmatprep.subr.bf16.mxu0 %v1163
    %1688 = vmatpush1.bf16.xpose.msra.mxu0 %v1162
    %1689 = vmatprep.subr.bf16.mxu0 %v1168
    %1690 = vmatpush1.bf16.xpose.msra.mxu0 %v1167
    %1691 = vmatprep.subr.bf16.mxu0 %v1173
    %1692 = vmatpush1.bf16.xpose.msra.mxu0 %v1172
    %1693 = vmatprep.subr.bf16.mxu0 %v1178
    %1694 = vmatpush1.bf16.xpose.msra.mxu0 %v1177
    %1695 = vmatprep.subr.bf16.mxu0 0
    %1696 = vmatpush1.bf16.xpose.msra.mxu0 0
    %1697 = vmatprep.subr.bf16.mxu0 0
    %1698 = vmatpush1.bf16.xpose.msra.mxu0 0
    %1699 = vmatprep.subr.bf16.mxu0 0
    %1700 = vmatpush1.bf16.xpose.msra.mxu0 0
    %1701 = vmatprep.subr.bf16.mxu0 0
    %1702 = vmatpush1.bf16.xpose.msra.mxu0 0
    %1703 = vmatprep.subr.bf16.mxu0 0
    %1704 = vmatpush1.bf16.xpose.msra.mxu0 0
    %1705 = vmatprep.subr.bf16.mxu0 0
    %1706 = vmatpush1.bf16.xpose.msra.mxu0 0
    %1707 = vmatprep.subr.bf16.mxu0 0
    %1708 = vmatpush1.bf16.xpose.msra.mxu0 0
    %1709 = vmatprep.subr.bf16.mxu0 0
    %1710 = vmatpush1.bf16.xpose.msra.mxu0 0
    %1711 = vmatprep.mubr.bf16.mxu0 %v333
    %1712 = vmatmul.mubr.bf16.gmra.mrb[0].mxu0 %v332
    %v1713 = vpop.f32.mrb[0].mxu0
    %v1714 = vadd.f32 %v1673, %v1713
    %v1715 = vpop.f32.mrb[0].mxu0
    %v1716 = vpop.f32.mrb[0].mxu0
    %v1717 = vadd.f32 %v1676, %v1716
    %v1718 = vpop.f32.mrb[0].mxu0
    %1719 = vdwg.mxu0
    %1720 = vmatprep.subr.bf16.mxu0 0
    %1721 = vmatpush1.bf16.xpose.msra.mxu0 %v1144
    %1722 = vmatprep.subr.bf16.mxu0 0
    %1723 = vmatpush1.bf16.xpose.msra.mxu0 %v1149
    %1724 = vmatprep.subr.bf16.mxu0 0
    %1725 = vmatpush1.bf16.xpose.msra.mxu0 %v1154
    %1726 = vmatprep.subr.bf16.mxu0 0
    %1727 = vmatpush1.bf16.xpose.msra.mxu0 %v1159
    %1728 = vmatprep.subr.bf16.mxu0 0
    %1729 = vmatpush1.bf16.xpose.msra.mxu0 %v1164
    %1730 = vmatprep.subr.bf16.mxu0 0
    %1731 = vmatpush1.bf16.xpose.msra.mxu0 %v1169
    %1732 = vmatprep.subr.bf16.mxu0 0
    %1733 = vmatpush1.bf16.xpose.msra.mxu0 %v1174
    %1734 = vmatprep.subr.bf16.mxu0 0
    %1735 = vmatpush1.bf16.xpose.msra.mxu0 %v1179
    %1736 = vmatprep.subr.bf16.mxu0 0
    %1737 = vmatpush1.bf16.xpose.msra.mxu0 0
    %1738 = vmatprep.subr.bf16.mxu0 0
    %1739 = vmatpush1.bf16.xpose.msra.mxu0 0
    %1740 = vmatprep.subr.bf16.mxu0 0
    %1741 = vmatpush1.bf16.xpose.msra.mxu0 0
    %1742 = vmatprep.subr.bf16.mxu0 0
    %1743 = vmatpush1.bf16.xpose.msra.mxu0 0
    %1744 = vmatprep.subr.bf16.mxu0 0
    %1745 = vmatpush1.bf16.xpose.msra.mxu0 0
    %1746 = vmatprep.subr.bf16.mxu0 0
    %1747 = vmatpush1.bf16.xpose.msra.mxu0 0
    %1748 = vmatprep.subr.bf16.mxu0 0
    %1749 = vmatpush1.bf16.xpose.msra.mxu0 0
    %1750 = vmatprep.subr.bf16.mxu0 0
    %1751 = vmatpush1.bf16.xpose.msra.mxu0 0
    %1752 = vmatprep.mubr.bf16.mxu0 0
    %1753 = vmatmul.mubr.bf16.gmra.mrb[0].mxu0 %v334
    %v1754 = vpop.f32.mrb[0].mxu0
    %v1755 = vadd.f32 %v1714, %v1754
    %v1756 = vpop.f32.mrb[0].mxu0
    %v1757 = vpop.f32.mrb[0].mxu0
    %v1758 = vadd.f32 %v1717, %v1757
    %v1759 = vpop.f32.mrb[0].mxu0
    %1760 = vdwg.mxu0
    %v1761 = vadd.f32 %v64, %v1501
    %v1762 = vadd.f32 %v65, %v1503
    %v1763 = vadd.f32 %v66, %v1630
    %v1764 = vadd.f32 %v67, %v1632
    %v1765 = vadd.f32 %v68, %v1755
    %v1766 = vadd.f32 %v69, %v1505
    %v1767 = vadd.f32 %v70, %v1507
    %v1768 = vadd.f32 %v71, %v1634
    %v1769 = vadd.f32 %v72, %v1636
    %v1770 = vadd.f32 %v73, %v1758
    %1771 = vst [vmem:[#allocation2] sm:$0xff] %v1761
    %1772 = vst [vmem:[#allocation2 + $0x8] sm:$0xff] %v1762
    %1773 = vst [vmem:[#allocation2 + $0x10] sm:$0xff] %v1763
    %1774 = vst [vmem:[#allocation2 + $0x18] sm:$0xff] %v1764
    %1775 = vst [vmem:[#allocation2 + $0x20] sm:$0xff] %v1765
    %1776 = vst [vmem:[#allocation2 + $0x28] sm:$0xff] %v1766
    %1777 = vst [vmem:[#allocation2 + $0x30] sm:$0xff] %v1767
    %1778 = vst [vmem:[#allocation2 + $0x38] sm:$0xff] %v1768
    %1779 = vst [vmem:[#allocation2 + $0x40] sm:$0xff] %v1769
    %1780 = vst [vmem:[#allocation2 + $0x48] sm:$0xff] %v1770
    // Predicated region
    $region26: #{tpu_custom_call.1} parent=1 // pred_check
      %p1781 = pneg %p44
    $region27: #{tpu_custom_call.1} parent=1 // pred_check_branch
      %1783 = sbr.rel (%p1781) target = $region29
    $region28: #{tpu_custom_call.1} parent=1 // pred_region
      %v1784 = vld [vmem:[#allocation2] sm:$0xff]
      %v1785 = vld [vmem:[#allocation2 + $0x8] sm:$0xff]
      %v1786 = vld [vmem:[#allocation2 + $0x10] sm:$0xff]
      %v1787 = vld [vmem:[#allocation2 + $0x18] sm:$0xff]
      %v1788 = vld [vmem:[#allocation2 + $0x20] sm:$0xff]
      %v1789 = vld [vmem:[#allocation2 + $0x28] sm:$0xff]
      %v1790 = vld [vmem:[#allocation2 + $0x30] sm:$0xff]
      %v1791 = vld [vmem:[#allocation2 + $0x38] sm:$0xff]
      %v1792 = vld [vmem:[#allocation2 + $0x40] sm:$0xff]
      %v1793 = vld [vmem:[#allocation2 + $0x48] sm:$0xff]
      %v1794 = vld [vmem:[%s2] sm:$0x1f]
      %v1796 = vlaneseq
      %v1797 = vshrl.u32 %v1796, 7
      %v1798 = vsub.s32 0, %v1797
      %v1799 = vrot.slane %v1794, %v1798
      %v1800 = vlaneseq
      %v1801 = vshrl.u32 %v1800, 7
      %v1802 = vsub.s32 1, %v1801
      %v1803 = vrot.slane %v1794, %v1802
      %v1804 = vlaneseq
      %v1805 = vshrl.u32 %v1804, 7
      %v1806 = vsub.s32 2, %v1805
      %v1807 = vrot.slane %v1794, %v1806
      %v1808 = vlaneseq
      %v1809 = vshrl.u32 %v1808, 7
      %v1810 = vsub.s32 3, %v1809
      %v1811 = vrot.slane %v1794, %v1810
      %v1812 = vlaneseq
      %v1813 = vshrl.u32 %v1812, 7
      %v1814 = vsub.s32 4, %v1813
      %v1815 = vrot.slane %v1794, %v1814
      %v1821 = vadd.f32 %v1784, %v1799
      %v1822 = vadd.f32 %v1785, %v1803
      %v1823 = vadd.f32 %v1786, %v1807
      %v1824 = vadd.f32 %v1787, %v1811
      %v1825 = vadd.f32 %v1788, %v1815
      %v1826 = vadd.f32 %v1789, %v1799
      %v1827 = vadd.f32 %v1790, %v1803
      %v1828 = vadd.f32 %v1791, %v1807
      %v1829 = vadd.f32 %v1792, %v1811
      %v1830 = vadd.f32 %v1793, %v1815
      %1831 = vst [vmem:[#allocation8] sm:$0xff] %v1821
      %1832 = vst [vmem:[#allocation8 + $0x8] sm:$0xff] %v1822
      %1833 = vst [vmem:[#allocation8 + $0x10] sm:$0xff] %v1823
      %1834 = vst [vmem:[#allocation8 + $0x18] sm:$0xff] %v1824
      %1835 = vst [vmem:[#allocation8 + $0x20] sm:$0xff] %v1825
      %1836 = vst [vmem:[#allocation8 + $0x28] sm:$0xff] %v1826
      %1837 = vst [vmem:[#allocation8 + $0x30] sm:$0xff] %v1827
      %1838 = vst [vmem:[#allocation8 + $0x38] sm:$0xff] %v1828
      %1839 = vst [vmem:[#allocation8 + $0x40] sm:$0xff] %v1829
      %1840 = vst [vmem:[#allocation8 + $0x48] sm:$0xff] %v1830
    $region29: #{tpu_custom_call.1} parent=1 // pred_fallthru
      _
    // Predicated region
    $region30: #{tpu_custom_call.1} parent=1 // pred_check
      _
    $region31: #{tpu_custom_call.1} parent=1 // pred_check_branch
      %1842 = sbr.rel (0) target = $region33
    $region32: #{tpu_custom_call.1} parent=1 // pred_region
      %s1844 = ssub.s32 1280, 1280
      %1845 = vsyncadd [#allocation5], %s1844
      %s1846 = sshll.u32 [#allocation8], 4
      %s1847 = int_to_ptr.vmem [resolvable:$true] %s1846
      %1852 = dma.vmem_to_hbm [thread:$0]  %s1847, 1280, %s3, [#allocation5], 640, 640, 40
    $region33: #{tpu_custom_call.1} parent=1 // pred_fallthru
      _
    // Predicated region
    $region34: #{tpu_custom_call.1} parent=1 // pred_check
      _
    $region35: #{tpu_custom_call.1} parent=1 // pred_check_branch
      %1854 = sbr.rel (0) target = $region37
    $region36: #{tpu_custom_call.1} parent=1 // pred_region
      %1855 = dma.done [#allocation5], 1280
    $region37: #{tpu_custom_call.1} parent=1 // pred_fallthru
      _
    %1856 = vsyncpa [#allocation4], 1
    %1857 = vsyncpa [#allocation7], 1
    %1858 = vsyncpa [#allocation5], 1

</llo_original>
